<compile_context>
chip_gen: v6e
topology: v6e:2x2x1
jax: 0.10.0
libtpu: 0.0.40
codegen_flags: <defaults>
</compile_context>

<pallas_src>
import math

import jax
import jax.numpy as jnp
import numpy as np
from jax.experimental import pallas as pl
from jax.experimental.pallas import tpu as pltpu

ALPHA = 0.8
D1 = 768   # audio feature width
D2 = 600   # visual feature width


def _round_up(x, m):
    return (x + m - 1) // m * m


def _cdiv(a, b):
    return -(-a // b)


def _block_diag(a, b):
    ra, ca = a.shape
    rb, cb = b.shape
    out = jnp.zeros((ra + rb, ca + cb), a.dtype)
    out = out.at[:ra, :ca].set(a)
    out = out.at[ra:, ca:].set(b)
    return out


def mica_kernel(f1_ref, f2_ref,
                e1w_ref, e2w_ref, e1b_ref, e2b_ref,
                attw_ref,
                w1_ref, wc_ref, wh_ref,
                wreg2_ref, sreg2_ref, ob_ref,
                out_ref):
    f32 = jnp.float32

    # Encoders (MXU).  Inputs may be bf16; accumulation is f32.
    aud = jnp.dot(f1_ref[...], e1w_ref[...], preferred_element_type=f32) + e1b_ref[...]   # (TB, 64)
    vis = jnp.dot(f2_ref[...], e2w_ref[...], preferred_element_type=f32) + e2b_ref[...]   # (TB, 64)
    av = jnp.concatenate([aud, vis], axis=-1)                                             # (TB, 128)

    # att_aud = aud @ (cat(aud, vis, 0).T @ Aw.T) collapses per sample to
    # self / cross dot products; the 1/sqrt(64) scale and the [affine_a |
    # affine_v] split are folded into the (3, 16) attw table on the host:
    #   att = [audio_att | vis_att] = tanh(saa*c0 + sxx*c1 + svv*c2)
    saa = jnp.sum(aud * aud, axis=-1, keepdims=True)   # (TB, 1)
    sxx = jnp.sum(aud * vis, axis=-1, keepdims=True)   # (TB, 1)
    svv = jnp.sum(vis * vis, axis=-1, keepdims=True)   # (TB, 1)
    attw = attw_ref[...]                               # (3, 16)
    att = jnp.tanh(saa * attw[0:1, :] + sxx * attw[1:2, :] + svv * attw[2:3, :])   # (TB, 16)

    # H = [H_a | H_v] = relu([aud|vis] @ W1 + att @ Wc)   with alpha/(1-alpha)
    # folded into the block-diagonal W1/Wc on the host.
    H = jnp.maximum(
        jnp.dot(av, w1_ref[...], preferred_element_type=f32)
        + jnp.dot(att, wc_ref[...], preferred_element_type=f32), 0.0)               # (TB, 64)

    # [alpha*W_ha(H_a) | (1-alpha)*W_hv(H_v)] via block-diagonal Wh.
    hah = jnp.dot(H, wh_ref[...], preferred_element_type=f32)                       # (TB, 16)

    # Regressor layers 1+2 folded on the host (exact: Dropout(0.6) is identity
    # at eval time).  Layer-1 acting on flatten(cat(ha.T + aud, hv.T + vis, 1))
    # is rewritten exactly as two dense matmuls.
    # TODO(synk): training-mode dropout (random masking) not implemented.
    out_ref[...] = (jnp.dot(av, wreg2_ref[...], preferred_element_type=f32)
                    + jnp.dot(hah, sreg2_ref[...], preferred_element_type=f32)
                    + ob_ref[...]).astype(out_ref.dtype)                             # (TB, 32)


def _prepare_weights(params, use_bf16):
    f32 = jnp.float32
    p = {k: jnp.asarray(v, f32) for k, v in params.items()}
    wdt = jnp.bfloat16 if use_bf16 else f32

    # Encoder weights: only the heavy MXU operands drop to bf16; biases stay f32.
    e1w = p['e1w'].T.astype(wdt)          # (768, 64)
    e2w = p['e2w'].T.astype(wdt)          # (600, 64)   (no lane padding)
    e1b = p['e1b'].reshape(1, 64)
    e2b = p['e2b'].reshape(1, 64)

    # Fused attention coefficient table, 1/sqrt(64) folded in:
    #   c0 = [aawT0 | 0], c1 = [aawT1 | avwT0], c2 = [0 | avwT1]
    s = 1.0 / math.sqrt(64.0)
    aawT = p['aaw'].T * s                 # (2, 8)
    avwT = p['avw'].T * s                 # (2, 8)
    z8 = jnp.zeros((1, 8), f32)
    attw = jnp.concatenate([
        jnp.concatenate([aawT[0:1], z8], axis=1),
        jnp.concatenate([aawT[1:2], avwT[0:1]], axis=1),
        jnp.concatenate([z8, avwT[1:2]], axis=1)], axis=0)          # (3, 16)

    # Block-diagonal fusions with alpha / (1 - alpha) folded in.
    w1 = _block_diag(ALPHA * p['wa'].T, (1.0 - ALPHA) * p['wv'].T)     # (128, 64)
    wc = _block_diag(ALPHA * p['wca'].T, (1.0 - ALPHA) * p['wcv'].T)   # (16, 64)
    wh = _block_diag(ALPHA * p['wha'].T, (1.0 - ALPHA) * p['whv'].T)   # (64, 16)

    # Exact rewrite of regressor layer 1 acting on
    #   flat[r*128 + c] = ha[r] + aud[c] (c<64)  or  hv[r] + vis[c-64] (c>=64):
    #   h = [aud|vis] @ WREG + [ha|hv] @ SREG + b1
    blocks = p['r1w'].T.reshape(8, 128, 128)              # [r, c, m] = r1w[m, r*128+c]
    wreg = jnp.concatenate(
        [blocks[:, :64, :].sum(0), blocks[:, 64:, :].sum(0)], axis=0)   # (128, 128)
    sreg = jnp.concatenate(
        [blocks[:, :64, :].sum(1), blocks[:, 64:, :].sum(1)], axis=0)   # (16, 128)

    # Fold regressor layer 2 into layer 1 (no nonlinearity between them).
    r2wT = p['r2w'].T                                      # (128, 32)
    wreg2 = wreg @ r2wT                                    # (128, 32)
    sreg2 = sreg @ r2wT                                    # (16, 32)
    ob = p['r1b'].reshape(1, 128) @ r2wT + p['r2b'].reshape(1, 32)      # (1, 32)

    return [e1w, e2w, e1b, e2b, attw, w1, wc, wh, wreg2, sreg2, ob]


def mica_net_forward(f1_norm, f2_norm, params, tile_b=None, use_bf16=True):
    N = f1_norm.shape[0]
    f1 = jnp.asarray(f1_norm).reshape(N, -1)
    f2 = jnp.asarray(f2_norm).reshape(N, -1)
    assert f1.shape == (N, D1) and f2.shape == (N, D2)

    # bf16 activation stream halves the dominant input DMA bytes.  Ideally the
    # producer already emits bf16; this astype is then a no-op.
    act_dt = jnp.bfloat16 if use_bf16 else jnp.float32
    f1 = f1.astype(act_dt)
    f2 = f2.astype(act_dt)

    # Batch tile: large enough to amortize the ~0.35 us per-grid-step cost,
    # small enough to double-buffer inside VMEM, and clamped so the grid has
    # >= 2 steps (v7x has 2 TensorCores sharing HBM).
    if tile_b is None:
        tile_b = 2048 if use_bf16 else 1024
    sub = 16 if use_bf16 else 8
    tb = max(sub, min(int(tile_b), _round_up(_cdiv(N, 2), sub)))
    tb = _round_up(tb, sub)
    grid_n = _cdiv(N, tb)
    Np = grid_n * tb
    if Np != N:
        # Row padding only for ragged batches (cheap at small N; supply a
        # tile-aligned batch in production to avoid this extra copy pass).
        f1 = jnp.pad(f1, ((0, Np - N), (0, 0)))
        f2 = jnp.pad(f2, ((0, Np - N), (0, 0)))

    weights = _prepare_weights(params, use_bf16)

    def wspec(a):
        # Constant block index -> Pallas does not re-DMA the block after step 0.
        return pl.BlockSpec(a.shape, lambda i: (0, 0))

    out = pl.pallas_call(
        mica_kernel,
        out_shape=jax.ShapeDtypeStruct((Np, 32), jnp.float32),
        grid=(grid_n,),
        in_specs=([pl.BlockSpec((tb, D1), lambda i: (i, 0)),
                   pl.BlockSpec((tb, D2), lambda i: (i, 0))]
                  + [wspec(a) for a in weights]),
        out_specs=pl.BlockSpec((tb, 32), lambda i: (i, 0)),
        compiler_params=pltpu.CompilerParams(
            dimension_semantics=("parallel",),
            # Covers double-buffered (tb, 768)+(tb, 600) tiles at the default
            # tile sizes on every generation (v5e/v6e default scoped limits
            # are 16/32 MiB; v7x physical VMEM is 64 MiB).
            vmem_limit_bytes=48 * 1024 * 1024),
    )(f1, f2, *weights)
    return out[:N]


def init_params(key):
    def linear(k, out_f, in_f, bias=True):
        k1, k2 = jax.random.split(k)
        bound = 1.0 / math.sqrt(in_f)
        wt = jax.random.uniform(k1, (out_f, in_f), jnp.float32, -bound, bound)
        b = jax.random.uniform(k2, (out_f,), jnp.float32, -bound, bound) if bias else None
        return wt, b

    keys = jax.random.split(key, 12)
    p = {}
    p['e1w'], p['e1b'] = linear(keys[0], 64, 768)
    p['e2w'], p['e2b'] = linear(keys[1], 64, 600)
    p['aaw'], _ = linear(keys[2], 8, 2, bias=False)
    p['avw'], _ = linear(keys[3], 8, 2, bias=False)
    p['wa'], _ = linear(keys[4], 32, 64, bias=False)
    p['wv'], _ = linear(keys[5], 32, 64, bias=False)
    p['wca'], _ = linear(keys[6], 32, 8, bias=False)
    p['wcv'], _ = linear(keys[7], 32, 8, bias=False)
    p['wha'], _ = linear(keys[8], 8, 32, bias=False)
    p['whv'], _ = linear(keys[9], 8, 32, bias=False)
    p['r1w'], p['r1b'] = linear(keys[10], 128, 1024)
    p['r2w'], p['r2b'] = linear(keys[11], 32, 128)
    return p


def mica_ref(f1_norm, f2_norm, p):
    """Pure-JAX reference, direct translation of the PyTorch forward (eval mode)."""
    outs = []
    for i in range(f1_norm.shape[0]):
        aud = f1_norm[i] @ p['e1w'].T + p['e1b']            # (1, 64)
        vis = f2_norm[i] @ p['e2w'].T + p['e2b']            # (1, 64)
        av = jnp.concatenate([aud, vis], axis=0)            # (2, 64)
        a_t = av.T @ p['aaw'].T                             # (64, 8)
        audio_att = jnp.tanh((aud @ a_t) / math.sqrt(av.shape[1]))
        v_t = av.T @ p['avw'].T
        vis_att = jnp.tanh((vis @ v_t) / math.sqrt(av.shape[1]))
        H_a = jax.nn.relu(ALPHA * (audio_att @ p['wca'].T + aud @ p['wa'].T))
        H_v = jax.nn.relu((1 - ALPHA) * (vis_att @ p['wcv'].T + vis @ p['wv'].T))
        att_a = ALPHA * (H_a @ p['wha'].T).T + aud          # (8, 64) via broadcast
        att_v = (1 - ALPHA) * (H_v @ p['whv'].T).T + vis    # (8, 64)
        flat = jnp.concatenate([att_a, att_v], axis=1).reshape(-1)   # (1024,)
        h = flat @ p['r1w'].T + p['r1b']
        outs.append(h @ p['r2w'].T + p['r2b'])
    return jnp.stack(outs)


if __name__ == "__main__":
    key = jax.random.PRNGKey(0)
    kp, k1, k2 = jax.random.split(key, 3)
    params = init_params(kp)

    N = 16
    f1 = jax.random.normal(k1, (N, 1, 768), jnp.float32)
    f2 = jax.random.normal(k2, (N, 1, 600), jnp.float32)
    ref = mica_ref(f1, f2, params)

    # Case 1: f32 activation stream, small explicit tile -> grid of 2
    # (exercises the multi-step pipelined path); tight tolerance.
    out = jax.block_until_ready(
        mica_net_forward(f1, f2, params, tile_b=8, use_bf16=False))
    np.testing.assert_allclose(np.asarray(out), np.asarray(ref), rtol=2e-3, atol=2e-3)

    # Case 2: default path (bf16 activation stream), ragged batch (N=11)
    # -> exercises row padding; bf16-appropriate tolerance.
    out2 = jax.block_until_ready(mica_net_forward(f1[:11], f2[:11], params))
    np.testing.assert_allclose(np.asarray(out2), np.asarray(ref[:11]), rtol=2e-2, atol=2e-2)

    print("KERNEL_OK")
</pallas_src>

<mosaic_0001>
module attributes {stable_mosaic.version = 11 : i64} {
  func.func @mica_kernel(%arg0: i32, %arg1: memref<8x768xf32, #tpu.memory_space<vmem>>, %arg2: memref<8x600xf32, #tpu.memory_space<vmem>>, %arg3: memref<768x64xf32, #tpu.memory_space<vmem>>, %arg4: memref<600x64xf32, #tpu.memory_space<vmem>>, %arg5: memref<1x64xf32, #tpu.memory_space<vmem>>, %arg6: memref<1x64xf32, #tpu.memory_space<vmem>>, %arg7: memref<3x16xf32, #tpu.memory_space<vmem>>, %arg8: memref<128x64xf32, #tpu.memory_space<vmem>>, %arg9: memref<16x64xf32, #tpu.memory_space<vmem>>, %arg10: memref<64x16xf32, #tpu.memory_space<vmem>>, %arg11: memref<128x32xf32, #tpu.memory_space<vmem>>, %arg12: memref<16x32xf32, #tpu.memory_space<vmem>>, %arg13: memref<1x32xf32, #tpu.memory_space<vmem>>, %arg14: memref<8x32xf32, #tpu.memory_space<vmem>>) attributes {dimension_semantics = [#tpu.dimension_semantics<parallel>], iteration_bounds = array<i64: 2>, scalar_prefetch = 0 : i64, scratch_operands = 0 : i64, tpu.core_type = #tpu.core_type<tc>, window_params = [{transform_indices = @transform_0, window_bounds = array<i64: 8, 768>}, {transform_indices = @transform_1, window_bounds = array<i64: 8, 600>}, {pipeline_mode = #tpu.pipeline_mode<synchronous>, transform_indices = @transform_2, window_bounds = array<i64: 768, 64>}, {pipeline_mode = #tpu.pipeline_mode<synchronous>, transform_indices = @transform_3, window_bounds = array<i64: 600, 64>}, {pipeline_mode = #tpu.pipeline_mode<synchronous>, transform_indices = @transform_4, window_bounds = array<i64: 1, 64>}, {pipeline_mode = #tpu.pipeline_mode<synchronous>, transform_indices = @transform_5, window_bounds = array<i64: 1, 64>}, {pipeline_mode = #tpu.pipeline_mode<synchronous>, transform_indices = @transform_6, window_bounds = array<i64: 3, 16>}, {pipeline_mode = #tpu.pipeline_mode<synchronous>, transform_indices = @transform_7, window_bounds = array<i64: 128, 64>}, {pipeline_mode = #tpu.pipeline_mode<synchronous>, transform_indices = @transform_8, window_bounds = array<i64: 16, 64>}, {pipeline_mode = #tpu.pipeline_mode<synchronous>, transform_indices = @transform_9, window_bounds = array<i64: 64, 16>}, {pipeline_mode = #tpu.pipeline_mode<synchronous>, transform_indices = @transform_10, window_bounds = array<i64: 128, 32>}, {pipeline_mode = #tpu.pipeline_mode<synchronous>, transform_indices = @transform_11, window_bounds = array<i64: 16, 32>}, {pipeline_mode = #tpu.pipeline_mode<synchronous>, transform_indices = @transform_12, window_bounds = array<i64: 1, 32>}, {transform_indices = @transform_13, window_bounds = array<i64: 8, 32>}]} {
    %c0 = arith.constant 0 : index
    %c0_0 = arith.constant 0 : index
    %0 = vector.load %arg1[%c0, %c0_0] : memref<8x768xf32, #tpu.memory_space<vmem>>, vector<8x768xf32>
    %c0_1 = arith.constant 0 : index
    %c0_2 = arith.constant 0 : index
    %1 = vector.load %arg3[%c0_1, %c0_2] : memref<768x64xf32, #tpu.memory_space<vmem>>, vector<768x64xf32>
    %cst = arith.constant dense<0.000000e+00> : vector<8x64xf32>
    %2 = tpu.matmul %0, %1, %cst {dimension_numbers = #tpu.dot_dimension_numbers<[1], [0], [0], [1], [0, 0, 1, 1], [], []>} : vector<8x768xf32>, vector<768x64xf32>, vector<8x64xf32> -> vector<8x64xf32>
    %c0_3 = arith.constant 0 : index
    %c0_4 = arith.constant 0 : index
    %3 = vector.load %arg5[%c0_3, %c0_4] : memref<1x64xf32, #tpu.memory_space<vmem>>, vector<1x64xf32>
    %4 = vector.broadcast %3 : vector<1x64xf32> to vector<8x64xf32>
    %5 = arith.addf %2, %4 : vector<8x64xf32>
    %c0_5 = arith.constant 0 : index
    %c0_6 = arith.constant 0 : index
    %6 = vector.load %arg2[%c0_5, %c0_6] : memref<8x600xf32, #tpu.memory_space<vmem>>, vector<8x600xf32>
    %c0_7 = arith.constant 0 : index
    %c0_8 = arith.constant 0 : index
    %7 = vector.load %arg4[%c0_7, %c0_8] : memref<600x64xf32, #tpu.memory_space<vmem>>, vector<600x64xf32>
    %cst_9 = arith.constant dense<0.000000e+00> : vector<8x64xf32>
    %8 = tpu.matmul %6, %7, %cst_9 {dimension_numbers = #tpu.dot_dimension_numbers<[1], [0], [0], [1], [0, 0, 1, 1], [], []>} : vector<8x600xf32>, vector<600x64xf32>, vector<8x64xf32> -> vector<8x64xf32>
    %c0_10 = arith.constant 0 : index
    %c0_11 = arith.constant 0 : index
    %9 = vector.load %arg6[%c0_10, %c0_11] : memref<1x64xf32, #tpu.memory_space<vmem>>, vector<1x64xf32>
    %10 = vector.broadcast %9 : vector<1x64xf32> to vector<8x64xf32>
    %11 = arith.addf %8, %10 : vector<8x64xf32>
    %12 = tpu.concatenate %5, %11 in 1 : vector<8x64xf32>, vector<8x64xf32> -> vector<8x128xf32>
    %13 = arith.mulf %5, %5 : vector<8x64xf32>
    %cst_12 = arith.constant dense<0.000000e+00> : vector<8xf32>
    %14 = vector.multi_reduction <add>, %13, %cst_12 [1] : vector<8x64xf32> to vector<8xf32>
    %15 = vector.shape_cast %14 : vector<8xf32> to vector<8x1xf32>
    %16 = arith.mulf %5, %11 : vector<8x64xf32>
    %cst_13 = arith.constant dense<0.000000e+00> : vector<8xf32>
    %17 = vector.multi_reduction <add>, %16, %cst_13 [1] : vector<8x64xf32> to vector<8xf32>
    %18 = vector.shape_cast %17 : vector<8xf32> to vector<8x1xf32>
    %19 = arith.mulf %11, %11 : vector<8x64xf32>
    %cst_14 = arith.constant dense<0.000000e+00> : vector<8xf32>
    %20 = vector.multi_reduction <add>, %19, %cst_14 [1] : vector<8x64xf32> to vector<8xf32>
    %21 = vector.shape_cast %20 : vector<8xf32> to vector<8x1xf32>
    %c0_15 = arith.constant 0 : index
    %c0_16 = arith.constant 0 : index
    %22 = vector.load %arg7[%c0_15, %c0_16] : memref<3x16xf32, #tpu.memory_space<vmem>>, vector<3x16xf32>
    %23 = vector.extract_strided_slice %22 {offsets = [0, 0], sizes = [1, 16], strides = [1, 1]} : vector<3x16xf32> to vector<1x16xf32>
    %24 = vector.broadcast %15 : vector<8x1xf32> to vector<8x16xf32>
    %25 = vector.broadcast %23 : vector<1x16xf32> to vector<8x16xf32>
    %26 = arith.mulf %24, %25 : vector<8x16xf32>
    %27 = vector.extract_strided_slice %22 {offsets = [1, 0], sizes = [1, 16], strides = [1, 1]} : vector<3x16xf32> to vector<1x16xf32>
    %28 = vector.broadcast %18 : vector<8x1xf32> to vector<8x16xf32>
    %29 = vector.broadcast %27 : vector<1x16xf32> to vector<8x16xf32>
    %30 = arith.mulf %28, %29 : vector<8x16xf32>
    %31 = arith.addf %26, %30 : vector<8x16xf32>
    %32 = vector.extract_strided_slice %22 {offsets = [2, 0], sizes = [1, 16], strides = [1, 1]} : vector<3x16xf32> to vector<1x16xf32>
    %33 = vector.broadcast %21 : vector<8x1xf32> to vector<8x16xf32>
    %34 = vector.broadcast %32 : vector<1x16xf32> to vector<8x16xf32>
    %35 = arith.mulf %33, %34 : vector<8x16xf32>
    %36 = arith.addf %31, %35 : vector<8x16xf32>
    %37 = math.tanh %36 : vector<8x16xf32>
    %c0_17 = arith.constant 0 : index
    %c0_18 = arith.constant 0 : index
    %38 = vector.load %arg8[%c0_17, %c0_18] : memref<128x64xf32, #tpu.memory_space<vmem>>, vector<128x64xf32>
    %cst_19 = arith.constant dense<0.000000e+00> : vector<8x64xf32>
    %39 = tpu.matmul %12, %38, %cst_19 {dimension_numbers = #tpu.dot_dimension_numbers<[1], [0], [0], [1], [0, 0, 1, 1], [], []>} : vector<8x128xf32>, vector<128x64xf32>, vector<8x64xf32> -> vector<8x64xf32>
    %c0_20 = arith.constant 0 : index
    %c0_21 = arith.constant 0 : index
    %40 = vector.load %arg9[%c0_20, %c0_21] : memref<16x64xf32, #tpu.memory_space<vmem>>, vector<16x64xf32>
    %cst_22 = arith.constant dense<0.000000e+00> : vector<8x64xf32>
    %41 = tpu.matmul %37, %40, %cst_22 {dimension_numbers = #tpu.dot_dimension_numbers<[1], [0], [0], [1], [0, 0, 1, 1], [], []>} : vector<8x16xf32>, vector<16x64xf32>, vector<8x64xf32> -> vector<8x64xf32>
    %42 = arith.addf %39, %41 : vector<8x64xf32>
    %cst_23 = arith.constant 0.000000e+00 : f32
    %43 = vector.broadcast %cst_23 : f32 to vector<8x64xf32>
    %44 = arith.maximumf %42, %43 : vector<8x64xf32>
    %c0_24 = arith.constant 0 : index
    %c0_25 = arith.constant 0 : index
    %45 = vector.load %arg10[%c0_24, %c0_25] : memref<64x16xf32, #tpu.memory_space<vmem>>, vector<64x16xf32>
    %cst_26 = arith.constant dense<0.000000e+00> : vector<8x16xf32>
    %46 = tpu.matmul %44, %45, %cst_26 {dimension_numbers = #tpu.dot_dimension_numbers<[1], [0], [0], [1], [0, 0, 1, 1], [], []>} : vector<8x64xf32>, vector<64x16xf32>, vector<8x16xf32> -> vector<8x16xf32>
    %c0_27 = arith.constant 0 : index
    %c0_28 = arith.constant 0 : index
    %47 = vector.load %arg11[%c0_27, %c0_28] : memref<128x32xf32, #tpu.memory_space<vmem>>, vector<128x32xf32>
    %cst_29 = arith.constant dense<0.000000e+00> : vector<8x32xf32>
    %48 = tpu.matmul %12, %47, %cst_29 {dimension_numbers = #tpu.dot_dimension_numbers<[1], [0], [0], [1], [0, 0, 1, 1], [], []>} : vector<8x128xf32>, vector<128x32xf32>, vector<8x32xf32> -> vector<8x32xf32>
    %c0_30 = arith.constant 0 : index
    %c0_31 = arith.constant 0 : index
    %49 = vector.load %arg12[%c0_30, %c0_31] : memref<16x32xf32, #tpu.memory_space<vmem>>, vector<16x32xf32>
    %cst_32 = arith.constant dense<0.000000e+00> : vector<8x32xf32>
    %50 = tpu.matmul %46, %49, %cst_32 {dimension_numbers = #tpu.dot_dimension_numbers<[1], [0], [0], [1], [0, 0, 1, 1], [], []>} : vector<8x16xf32>, vector<16x32xf32>, vector<8x32xf32> -> vector<8x32xf32>
    %51 = arith.addf %48, %50 : vector<8x32xf32>
    %c0_33 = arith.constant 0 : index
    %c0_34 = arith.constant 0 : index
    %52 = vector.load %arg13[%c0_33, %c0_34] : memref<1x32xf32, #tpu.memory_space<vmem>>, vector<1x32xf32>
    %53 = vector.broadcast %52 : vector<1x32xf32> to vector<8x32xf32>
    %54 = arith.addf %51, %53 : vector<8x32xf32>
    %c0_35 = arith.constant 0 : index
    %c0_36 = arith.constant 0 : index
    %55 = vector.load %arg14[%c0_35, %c0_36] : memref<8x32xf32, #tpu.memory_space<vmem>>, vector<8x32xf32>
    tpu.vector_store %arg14[%c0_35, %c0_36], %54 {strides = array<i32>} : memref<8x32xf32, #tpu.memory_space<vmem>>, vector<8x32xf32>,
    return
  }
  func.func @transform_0(%arg0: i32) -> (i32, i32) {
    %c0_i32 = arith.constant 0 : i32
    %c0_i32_0 = arith.constant 0 : i32
    return %arg0, %c0_i32 : i32, i32
  }
  func.func @transform_1(%arg0: i32) -> (i32, i32) {
    %c0_i32 = arith.constant 0 : i32
    %c0_i32_0 = arith.constant 0 : i32
    return %arg0, %c0_i32 : i32, i32
  }
  func.func @transform_2(%arg0: i32) -> (i32, i32) {
    %c0_i32 = arith.constant 0 : i32
    %c0_i32_0 = arith.constant 0 : i32
    %c0_i32_1 = arith.constant 0 : i32
    return %c0_i32, %c0_i32_0 : i32, i32
  }
  func.func @transform_3(%arg0: i32) -> (i32, i32) {
    %c0_i32 = arith.constant 0 : i32
    %c0_i32_0 = arith.constant 0 : i32
    %c0_i32_1 = arith.constant 0 : i32
    return %c0_i32, %c0_i32_0 : i32, i32
  }
  func.func @transform_4(%arg0: i32) -> (i32, i32) {
    %c0_i32 = arith.constant 0 : i32
    %c0_i32_0 = arith.constant 0 : i32
    %c0_i32_1 = arith.constant 0 : i32
    return %c0_i32, %c0_i32_0 : i32, i32
  }
  func.func @transform_5(%arg0: i32) -> (i32, i32) {
    %c0_i32 = arith.constant 0 : i32
    %c0_i32_0 = arith.constant 0 : i32
    %c0_i32_1 = arith.constant 0 : i32
    return %c0_i32, %c0_i32_0 : i32, i32
  }
  func.func @transform_6(%arg0: i32) -> (i32, i32) {
    %c0_i32 = arith.constant 0 : i32
    %c0_i32_0 = arith.constant 0 : i32
    %c0_i32_1 = arith.constant 0 : i32
    return %c0_i32, %c0_i32_0 : i32, i32
  }
  func.func @transform_7(%arg0: i32) -> (i32, i32) {
    %c0_i32 = arith.constant 0 : i32
    %c0_i32_0 = arith.constant 0 : i32
    %c0_i32_1 = arith.constant 0 : i32
    return %c0_i32, %c0_i32_0 : i32, i32
  }
  func.func @transform_8(%arg0: i32) -> (i32, i32) {
    %c0_i32 = arith.constant 0 : i32
    %c0_i32_0 = arith.constant 0 : i32
    %c0_i32_1 = arith.constant 0 : i32
    return %c0_i32, %c0_i32_0 : i32, i32
  }
  func.func @transform_9(%arg0: i32) -> (i32, i32) {
    %c0_i32 = arith.constant 0 : i32
    %c0_i32_0 = arith.constant 0 : i32
    %c0_i32_1 = arith.constant 0 : i32
    return %c0_i32, %c0_i32_0 : i32, i32
  }
  func.func @transform_10(%arg0: i32) -> (i32, i32) {
    %c0_i32 = arith.constant 0 : i32
    %c0_i32_0 = arith.constant 0 : i32
    %c0_i32_1 = arith.constant 0 : i32
    return %c0_i32, %c0_i32_0 : i32, i32
  }
  func.func @transform_11(%arg0: i32) -> (i32, i32) {
    %c0_i32 = arith.constant 0 : i32
    %c0_i32_0 = arith.constant 0 : i32
    %c0_i32_1 = arith.constant 0 : i32
    return %c0_i32, %c0_i32_0 : i32, i32
  }
  func.func @transform_12(%arg0: i32) -> (i32, i32) {
    %c0_i32 = arith.constant 0 : i32
    %c0_i32_0 = arith.constant 0 : i32
    %c0_i32_1 = arith.constant 0 : i32
    return %c0_i32, %c0_i32_0 : i32, i32
  }
  func.func @transform_13(%arg0: i32) -> (i32, i32) {
    %c0_i32 = arith.constant 0 : i32
    %c0_i32_0 = arith.constant 0 : i32
    return %arg0, %c0_i32 : i32, i32
  }
}

</mosaic_0001>

<llo_original>
// kernel: tpu_custom_call.1
$region0: #{tpu_custom_call.1}
  #allocation0 [shape = 'u32[]', space=smem, size = 0x4, offset = 0x4, fixed_abs, tag = 'smem constant byte address 0x4 - core index']
  #allocation1 [shape = 'u32[144,128]{1,0:T(1,128)}', space=vmem, size = 0x12000, scoped, tag = 'internal scratch']
  %s0 = inlined_call_operand.vmem [shape: f32[16,768], index: 0, kind: input, shape index: {}]
  %s1 = inlined_call_operand.vmem [shape: f32[16,600], index: 1, kind: input, shape index: {}]
  %s2 = inlined_call_operand.vmem [shape: f32[768,64], index: 2, kind: input, shape index: {}]
  %s3 = inlined_call_operand.vmem [shape: f32[600,64], index: 3, kind: input, shape index: {}]
  %s4 = inlined_call_operand.vmem [shape: f32[1,64], index: 4, kind: input, shape index: {}]
  %s5 = inlined_call_operand.vmem [shape: f32[1,64], index: 5, kind: input, shape index: {}]
  %s6 = inlined_call_operand.vmem [shape: f32[3,16], index: 6, kind: input, shape index: {}]
  %s7 = inlined_call_operand.vmem [shape: f32[128,64], index: 7, kind: input, shape index: {}]
  %s8 = inlined_call_operand.vmem [shape: f32[16,64], index: 8, kind: input, shape index: {}]
  %s9 = inlined_call_operand.vmem [shape: f32[64,16], index: 9, kind: input, shape index: {}]
  %s10 = inlined_call_operand.vmem [shape: f32[128,32], index: 10, kind: input, shape index: {}]
  %s11 = inlined_call_operand.vmem [shape: f32[16,32], index: 11, kind: input, shape index: {}]
  %s12 = inlined_call_operand.vmem [shape: f32[1,32], index: 12, kind: input, shape index: {}]
  %s13 = inlined_call_operand.hbm [shape: f32[16,32], index: 13, kind: output, shape index: {}]
  %s14 = sld [smem:[#allocation0]]
  $region85: #{tpu_custom_call.1} parent=0
    _
  %s16 = ssub.s32 1, %s14
  %s17 = scalar_select 0, %s16, %s14
  $region1: #{tpu_custom_call.1} parent=0
    #allocation2 [shape = 'u8[8192]{0}', space=vmem, size = 0x2000, scoped, tag = 'output window, operand 0']
    #allocation3 [shape = 's32[2]{0}', space=sflag, size = 0x8, scoped, tag = 'scoped memory for tpu_custom_call.1']
    %18 = vsyncpa [#allocation3], 0
    %s19 = scalar_lea.sflag [#allocation3], 1
    %20 = vsyncpa %s19, 0
    loop: start=0, step=1, limit=4
    $region2: #{tpu_custom_call.1} parent=1 // loop_pre_header
      _
    $region3: #{tpu_custom_call.1} parent=1 // loop_header
      %s22 = sphi 0, %s26
      %p23 = scmp.ge.s32.totalorder %s22, 4
      %s32 = sphi 0, %s34
      %s35 = sphi 0, %s32
      %s36 = sphi 0, %s35
      %s52 = sphi 0, %s36
      %s58 = sphi 0, %s60
      %s61 = sphi 0, %s58
      %s62 = sphi 0, %s61
      %s78 = sphi 0, %s62
      %s82 = sphi 0, %s82
      %s84 = sphi 0, %s82
      %s85 = sphi 0, %s84
      %s99 = sphi 0, %s85
      %s103 = sphi 0, %s103
      %s105 = sphi 0, %s103
      %s106 = sphi 0, %s105
      %s120 = sphi 0, %s106
      %s124 = sphi 0, %s124
      %s126 = sphi 0, %s124
      %s127 = sphi 0, %s126
      %s141 = sphi 0, %s127
      %s145 = sphi 0, %s145
      %s147 = sphi 0, %s145
      %s148 = sphi 0, %s147
      %s162 = sphi 0, %s148
      %s166 = sphi 0, %s166
      %s168 = sphi 0, %s166
      %s169 = sphi 0, %s168
      %s183 = sphi 0, %s169
      %s187 = sphi 0, %s187
      %s189 = sphi 0, %s187
      %s190 = sphi 0, %s189
      %s204 = sphi 0, %s190
      %s208 = sphi 0, %s208
      %s210 = sphi 0, %s208
      %s211 = sphi 0, %s210
      %s225 = sphi 0, %s211
      %s229 = sphi 0, %s229
      %s231 = sphi 0, %s229
      %s232 = sphi 0, %s231
      %s246 = sphi 0, %s232
      %s250 = sphi 0, %s250
      %s252 = sphi 0, %s250
      %s253 = sphi 0, %s252
      %s267 = sphi 0, %s253
      %s271 = sphi 0, %s271
      %s273 = sphi 0, %s271
      %s274 = sphi 0, %s273
      %s288 = sphi 0, %s274
      %s292 = sphi 0, %s292
      %s294 = sphi 0, %s292
      %s295 = sphi 0, %s294
      %s309 = sphi 0, %s295
      %s315 = sphi 0, %s317
      %s318 = sphi 0, %s315
      %s319 = sphi 0, %s318
      %s335 = sphi 0, %s319
    $region4: #{tpu_custom_call.1} parent=1 // loop_header_branch
      %25 = sbr.rel (%p23) target = $region8
    $region5: #{tpu_custom_call.1} parent=1 // loop_body
      %s27 = ssub.s32 %s22, 1
      %s28 = ssub.s32 %s22, 2
      %s29 = sadd.s32 %s22, 1
      %s30 = ssub.s32 %s22, %s29
      %p31 = scmp.eq.s32.totalorder %s30, 0
      %s33 = sadd.s32 %s32, 1
      %s34 = scalar_select %p31, %s32, %s33
      %p37 = pneg %p31
      %p38 = scmp.eq.s32.totalorder %s22, 1
      %p39 = por %p37, %p38
      %p40 = scmp.ne.s32.totalorder %s32, %s35
      %p41 = scmp.eq.s32.totalorder %s22, 0
      %p42 = por %p40, %p41
      %p43 = scmp.ne.s32.totalorder %s32, %s35
      %p44 = scmp.eq.s32.totalorder %s27, 1
      %p45 = por %p43, %p44
      %p46 = scmp.ne.s32.totalorder %s35, %s36
      %p47 = scmp.eq.s32.totalorder %s27, 0
      %p48 = por %p46, %p47
      %p49 = scmp.ne.s32.totalorder %s35, %s36
      %p50 = scmp.eq.s32.totalorder %s28, 1
      %p51 = por %p49, %p50
      %p53 = scmp.ne.s32.totalorder %s36, %s52
      %p54 = scmp.eq.s32.totalorder %s28, 0
      %p55 = por %p53, %p54
      %s56 = ssub.s32 %s22, %s29
      %p57 = scmp.eq.s32.totalorder %s56, 0
      %s59 = sadd.s32 %s58, 1
      %s60 = scalar_select %p57, %s58, %s59
      %p63 = pneg %p57
      %p64 = scmp.eq.s32.totalorder %s22, 1
      %p65 = por %p63, %p64
      %p66 = scmp.ne.s32.totalorder %s58, %s61
      %p67 = scmp.eq.s32.totalorder %s22, 0
      %p68 = por %p66, %p67
      %p69 = scmp.ne.s32.totalorder %s58, %s61
      %p70 = scmp.eq.s32.totalorder %s27, 1
      %p71 = por %p69, %p70
      %p72 = scmp.ne.s32.totalorder %s61, %s62
      %p73 = scmp.eq.s32.totalorder %s27, 0
      %p74 = por %p72, %p73
      %p75 = scmp.ne.s32.totalorder %s61, %s62
      %p76 = scmp.eq.s32.totalorder %s28, 1
      %p77 = por %p75, %p76
      %p79 = scmp.ne.s32.totalorder %s62, %s78
      %p80 = scmp.eq.s32.totalorder %s28, 0
      %p81 = por %p79, %p80
      %s83 = sadd.s32 %s82, 1
      %p86 = scmp.eq.s32.totalorder %s22, 1
      %p87 = scmp.ne.s32.totalorder %s82, %s84
      %p88 = scmp.eq.s32.totalorder %s22, 0
      %p89 = por %p87, %p88
      %p90 = scmp.ne.s32.totalorder %s82, %s84
      %p91 = scmp.eq.s32.totalorder %s27, 1
      %p92 = por %p90, %p91
      %p93 = scmp.ne.s32.totalorder %s84, %s85
      %p94 = scmp.eq.s32.totalorder %s27, 0
      %p95 = por %p93, %p94
      %p96 = scmp.ne.s32.totalorder %s84, %s85
      %p97 = scmp.eq.s32.totalorder %s28, 1
      %p98 = por %p96, %p97
      %p100 = scmp.ne.s32.totalorder %s85, %s99
      %p101 = scmp.eq.s32.totalorder %s28, 0
      %p102 = por %p100, %p101
      %s104 = sadd.s32 %s103, 1
      %p107 = scmp.eq.s32.totalorder %s22, 1
      %p108 = scmp.ne.s32.totalorder %s103, %s105
      %p109 = scmp.eq.s32.totalorder %s22, 0
      %p110 = por %p108, %p109
      %p111 = scmp.ne.s32.totalorder %s103, %s105
      %p112 = scmp.eq.s32.totalorder %s27, 1
      %p113 = por %p111, %p112
      %p114 = scmp.ne.s32.totalorder %s105, %s106
      %p115 = scmp.eq.s32.totalorder %s27, 0
      %p116 = por %p114, %p115
      %p117 = scmp.ne.s32.totalorder %s105, %s106
      %p118 = scmp.eq.s32.totalorder %s28, 1
      %p119 = por %p117, %p118
      %p121 = scmp.ne.s32.totalorder %s106, %s120
      %p122 = scmp.eq.s32.totalorder %s28, 0
      %p123 = por %p121, %p122
      %s125 = sadd.s32 %s124, 1
      %p128 = scmp.eq.s32.totalorder %s22, 1
      %p129 = scmp.ne.s32.totalorder %s124, %s126
      %p130 = scmp.eq.s32.totalorder %s22, 0
      %p131 = por %p129, %p130
      %p132 = scmp.ne.s32.totalorder %s124, %s126
      %p133 = scmp.eq.s32.totalorder %s27, 1
      %p134 = por %p132, %p133
      %p135 = scmp.ne.s32.totalorder %s126, %s127
      %p136 = scmp.eq.s32.totalorder %s27, 0
      %p137 = por %p135, %p136
      %p138 = scmp.ne.s32.totalorder %s126, %s127
      %p139 = scmp.eq.s32.totalorder %s28, 1
      %p140 = por %p138, %p139
      %p142 = scmp.ne.s32.totalorder %s127, %s141
      %p143 = scmp.eq.s32.totalorder %s28, 0
      %p144 = por %p142, %p143
      %s146 = sadd.s32 %s145, 1
      %p149 = scmp.eq.s32.totalorder %s22, 1
      %p150 = scmp.ne.s32.totalorder %s145, %s147
      %p151 = scmp.eq.s32.totalorder %s22, 0
      %p152 = por %p150, %p151
      %p153 = scmp.ne.s32.totalorder %s145, %s147
      %p154 = scmp.eq.s32.totalorder %s27, 1
      %p155 = por %p153, %p154
      %p156 = scmp.ne.s32.totalorder %s147, %s148
      %p157 = scmp.eq.s32.totalorder %s27, 0
      %p158 = por %p156, %p157
      %p159 = scmp.ne.s32.totalorder %s147, %s148
      %p160 = scmp.eq.s32.totalorder %s28, 1
      %p161 = por %p159, %p160
      %p163 = scmp.ne.s32.totalorder %s148, %s162
      %p164 = scmp.eq.s32.totalorder %s28, 0
      %p165 = por %p163, %p164
      %s167 = sadd.s32 %s166, 1
      %p170 = scmp.eq.s32.totalorder %s22, 1
      %p171 = scmp.ne.s32.totalorder %s166, %s168
      %p172 = scmp.eq.s32.totalorder %s22, 0
      %p173 = por %p171, %p172
      %p174 = scmp.ne.s32.totalorder %s166, %s168
      %p175 = scmp.eq.s32.totalorder %s27, 1
      %p176 = por %p174, %p175
      %p177 = scmp.ne.s32.totalorder %s168, %s169
      %p178 = scmp.eq.s32.totalorder %s27, 0
      %p179 = por %p177, %p178
      %p180 = scmp.ne.s32.totalorder %s168, %s169
      %p181 = scmp.eq.s32.totalorder %s28, 1
      %p182 = por %p180, %p181
      %p184 = scmp.ne.s32.totalorder %s169, %s183
      %p185 = scmp.eq.s32.totalorder %s28, 0
      %p186 = por %p184, %p185
      %s188 = sadd.s32 %s187, 1
      %p191 = scmp.eq.s32.totalorder %s22, 1
      %p192 = scmp.ne.s32.totalorder %s187, %s189
      %p193 = scmp.eq.s32.totalorder %s22, 0
      %p194 = por %p192, %p193
      %p195 = scmp.ne.s32.totalorder %s187, %s189
      %p196 = scmp.eq.s32.totalorder %s27, 1
      %p197 = por %p195, %p196
      %p198 = scmp.ne.s32.totalorder %s189, %s190
      %p199 = scmp.eq.s32.totalorder %s27, 0
      %p200 = por %p198, %p199
      %p201 = scmp.ne.s32.totalorder %s189, %s190
      %p202 = scmp.eq.s32.totalorder %s28, 1
      %p203 = por %p201, %p202
      %p205 = scmp.ne.s32.totalorder %s190, %s204
      %p206 = scmp.eq.s32.totalorder %s28, 0
      %p207 = por %p205, %p206
      %s209 = sadd.s32 %s208, 1
      %p212 = scmp.eq.s32.totalorder %s22, 1
      %p213 = scmp.ne.s32.totalorder %s208, %s210
      %p214 = scmp.eq.s32.totalorder %s22, 0
      %p215 = por %p213, %p214
      %p216 = scmp.ne.s32.totalorder %s208, %s210
      %p217 = scmp.eq.s32.totalorder %s27, 1
      %p218 = por %p216, %p217
      %p219 = scmp.ne.s32.totalorder %s210, %s211
      %p220 = scmp.eq.s32.totalorder %s27, 0
      %p221 = por %p219, %p220
      %p222 = scmp.ne.s32.totalorder %s210, %s211
      %p223 = scmp.eq.s32.totalorder %s28, 1
      %p224 = por %p222, %p223
      %p226 = scmp.ne.s32.totalorder %s211, %s225
      %p227 = scmp.eq.s32.totalorder %s28, 0
      %p228 = por %p226, %p227
      %s230 = sadd.s32 %s229, 1
      %p233 = scmp.eq.s32.totalorder %s22, 1
      %p234 = scmp.ne.s32.totalorder %s229, %s231
      %p235 = scmp.eq.s32.totalorder %s22, 0
      %p236 = por %p234, %p235
      %p237 = scmp.ne.s32.totalorder %s229, %s231
      %p238 = scmp.eq.s32.totalorder %s27, 1
      %p239 = por %p237, %p238
      %p240 = scmp.ne.s32.totalorder %s231, %s232
      %p241 = scmp.eq.s32.totalorder %s27, 0
      %p242 = por %p240, %p241
      %p243 = scmp.ne.s32.totalorder %s231, %s232
      %p244 = scmp.eq.s32.totalorder %s28, 1
      %p245 = por %p243, %p244
      %p247 = scmp.ne.s32.totalorder %s232, %s246
      %p248 = scmp.eq.s32.totalorder %s28, 0
      %p249 = por %p247, %p248
      %s251 = sadd.s32 %s250, 1
      %p254 = scmp.eq.s32.totalorder %s22, 1
      %p255 = scmp.ne.s32.totalorder %s250, %s252
      %p256 = scmp.eq.s32.totalorder %s22, 0
      %p257 = por %p255, %p256
      %p258 = scmp.ne.s32.totalorder %s250, %s252
      %p259 = scmp.eq.s32.totalorder %s27, 1
      %p260 = por %p258, %p259
      %p261 = scmp.ne.s32.totalorder %s252, %s253
      %p262 = scmp.eq.s32.totalorder %s27, 0
      %p263 = por %p261, %p262
      %p264 = scmp.ne.s32.totalorder %s252, %s253
      %p265 = scmp.eq.s32.totalorder %s28, 1
      %p266 = por %p264, %p265
      %p268 = scmp.ne.s32.totalorder %s253, %s267
      %p269 = scmp.eq.s32.totalorder %s28, 0
      %p270 = por %p268, %p269
      %s272 = sadd.s32 %s271, 1
      %p275 = scmp.eq.s32.totalorder %s22, 1
      %p276 = scmp.ne.s32.totalorder %s271, %s273
      %p277 = scmp.eq.s32.totalorder %s22, 0
      %p278 = por %p276, %p277
      %p279 = scmp.ne.s32.totalorder %s271, %s273
      %p280 = scmp.eq.s32.totalorder %s27, 1
      %p281 = por %p279, %p280
      %p282 = scmp.ne.s32.totalorder %s273, %s274
      %p283 = scmp.eq.s32.totalorder %s27, 0
      %p284 = por %p282, %p283
      %p285 = scmp.ne.s32.totalorder %s273, %s274
      %p286 = scmp.eq.s32.totalorder %s28, 1
      %p287 = por %p285, %p286
      %p289 = scmp.ne.s32.totalorder %s274, %s288
      %p290 = scmp.eq.s32.totalorder %s28, 0
      %p291 = por %p289, %p290
      %s293 = sadd.s32 %s292, 1
      %p296 = scmp.eq.s32.totalorder %s22, 1
      %p297 = scmp.ne.s32.totalorder %s292, %s294
      %p298 = scmp.eq.s32.totalorder %s22, 0
      %p299 = por %p297, %p298
      %p300 = scmp.ne.s32.totalorder %s292, %s294
      %p301 = scmp.eq.s32.totalorder %s27, 1
      %p302 = por %p300, %p301
      %p303 = scmp.ne.s32.totalorder %s294, %s295
      %p304 = scmp.eq.s32.totalorder %s27, 0
      %p305 = por %p303, %p304
      %p306 = scmp.ne.s32.totalorder %s294, %s295
      %p307 = scmp.eq.s32.totalorder %s28, 1
      %p308 = por %p306, %p307
      %p310 = scmp.ne.s32.totalorder %s295, %s309
      %p311 = scmp.eq.s32.totalorder %s28, 0
      %p312 = por %p310, %p311
      %s313 = ssub.s32 %s22, %s29
      %p314 = scmp.eq.s32.totalorder %s313, 0
      %s316 = sadd.s32 %s315, 1
      %s317 = scalar_select %p314, %s315, %s316
      %p320 = pneg %p314
      %p321 = scmp.eq.s32.totalorder %s22, 1
      %p322 = por %p320, %p321
      %p323 = scmp.ne.s32.totalorder %s315, %s318
      %p324 = scmp.eq.s32.totalorder %s22, 0
      %p325 = por %p323, %p324
      %p326 = scmp.ne.s32.totalorder %s315, %s318
      %p327 = scmp.eq.s32.totalorder %s27, 1
      %p328 = por %p326, %p327
      %p329 = scmp.ne.s32.totalorder %s318, %s319
      %p330 = scmp.eq.s32.totalorder %s27, 0
      %p331 = por %p329, %p330
      %p332 = scmp.ne.s32.totalorder %s318, %s319
      %p333 = scmp.eq.s32.totalorder %s28, 1
      %p334 = por %p332, %p333
      %p336 = scmp.ne.s32.totalorder %s319, %s335
      %p337 = scmp.eq.s32.totalorder %s28, 0
      %p338 = por %p336, %p337
      %p339 = scmp.le.s32.totalorder 1, %s22
      %p340 = scmp.lt.s32.totalorder %s22, 3
      %p341 = pnand %p339, %p340
      %p342 = pneg %p341
      // Predicated region
      $region9: #{tpu_custom_call.1} parent=5 // pred_check
        _
      $region10: #{tpu_custom_call.1} parent=5 // pred_check_branch
        %344 = sbr.rel (%p341) target = $region12
      $region11: #{tpu_custom_call.1} parent=5 // pred_region
        %s345 = ssub.s32 %s22, 1
        // Predicated region
        $region13: #{tpu_custom_call.1} parent=11 // pred_check
          %p346 = pneg %p95
        $region14: #{tpu_custom_call.1} parent=11 // pred_check_branch
          %348 = sbr.rel (%p346) target = $region16
        $region15: #{tpu_custom_call.1} parent=11 // pred_region
          _
        $region16: #{tpu_custom_call.1} parent=11 // pred_fallthru
          _
        // Predicated region
        $region17: #{tpu_custom_call.1} parent=11 // pred_check
          %p349 = pneg %p116
        $region18: #{tpu_custom_call.1} parent=11 // pred_check_branch
          %351 = sbr.rel (%p349) target = $region20
        $region19: #{tpu_custom_call.1} parent=11 // pred_region
          _
        $region20: #{tpu_custom_call.1} parent=11 // pred_fallthru
          _
        // Predicated region
        $region21: #{tpu_custom_call.1} parent=11 // pred_check
          %p352 = pneg %p137
        $region22: #{tpu_custom_call.1} parent=11 // pred_check_branch
          %354 = sbr.rel (%p352) target = $region24
        $region23: #{tpu_custom_call.1} parent=11 // pred_region
          _
        $region24: #{tpu_custom_call.1} parent=11 // pred_fallthru
          _
        // Predicated region
        $region25: #{tpu_custom_call.1} parent=11 // pred_check
          %p355 = pneg %p158
        $region26: #{tpu_custom_call.1} parent=11 // pred_check_branch
          %357 = sbr.rel (%p355) target = $region28
        $region27: #{tpu_custom_call.1} parent=11 // pred_region
          _
        $region28: #{tpu_custom_call.1} parent=11 // pred_fallthru
          _
        // Predicated region
        $region29: #{tpu_custom_call.1} parent=11 // pred_check
          %p358 = pneg %p179
        $region30: #{tpu_custom_call.1} parent=11 // pred_check_branch
          %360 = sbr.rel (%p358) target = $region32
        $region31: #{tpu_custom_call.1} parent=11 // pred_region
          _
        $region32: #{tpu_custom_call.1} parent=11 // pred_fallthru
          _
        // Predicated region
        $region33: #{tpu_custom_call.1} parent=11 // pred_check
          %p361 = pneg %p200
        $region34: #{tpu_custom_call.1} parent=11 // pred_check_branch
          %363 = sbr.rel (%p361) target = $region36
        $region35: #{tpu_custom_call.1} parent=11 // pred_region
          _
        $region36: #{tpu_custom_call.1} parent=11 // pred_fallthru
          _
        // Predicated region
        $region37: #{tpu_custom_call.1} parent=11 // pred_check
          %p364 = pneg %p221
        $region38: #{tpu_custom_call.1} parent=11 // pred_check_branch
          %366 = sbr.rel (%p364) target = $region40
        $region39: #{tpu_custom_call.1} parent=11 // pred_region
          _
        $region40: #{tpu_custom_call.1} parent=11 // pred_fallthru
          _
        // Predicated region
        $region41: #{tpu_custom_call.1} parent=11 // pred_check
          %p367 = pneg %p242
        $region42: #{tpu_custom_call.1} parent=11 // pred_check_branch
          %369 = sbr.rel (%p367) target = $region44
        $region43: #{tpu_custom_call.1} parent=11 // pred_region
          _
        $region44: #{tpu_custom_call.1} parent=11 // pred_fallthru
          _
        // Predicated region
        $region45: #{tpu_custom_call.1} parent=11 // pred_check
          %p370 = pneg %p263
        $region46: #{tpu_custom_call.1} parent=11 // pred_check_branch
          %372 = sbr.rel (%p370) target = $region48
        $region47: #{tpu_custom_call.1} parent=11 // pred_region
          _
        $region48: #{tpu_custom_call.1} parent=11 // pred_fallthru
          _
        // Predicated region
        $region49: #{tpu_custom_call.1} parent=11 // pred_check
          %p373 = pneg %p284
        $region50: #{tpu_custom_call.1} parent=11 // pred_check_branch
          %375 = sbr.rel (%p373) target = $region52
        $region51: #{tpu_custom_call.1} parent=11 // pred_region
          _
        $region52: #{tpu_custom_call.1} parent=11 // pred_fallthru
          _
        // Predicated region
        $region53: #{tpu_custom_call.1} parent=11 // pred_check
          %p376 = pneg %p305
        $region54: #{tpu_custom_call.1} parent=11 // pred_check_branch
          %378 = sbr.rel (%p376) target = $region56
        $region55: #{tpu_custom_call.1} parent=11 // pred_region
          _
        $region56: #{tpu_custom_call.1} parent=11 // pred_fallthru
          _
      $region12: #{tpu_custom_call.1} parent=5 // pred_fallthru
        _
      %p379 = scmp.lt.s32.totalorder %s22, 2
      // Predicated region
      $region57: #{tpu_custom_call.1} parent=5 // pred_check
        %p380 = pneg %p379
      $region58: #{tpu_custom_call.1} parent=5 // pred_check_branch
        %382 = sbr.rel (%p380) target = $region60
      $region59: #{tpu_custom_call.1} parent=5 // pred_region
        // Predicated region
        $region61: #{tpu_custom_call.1} parent=59 // pred_check
          %p383 = pneg %p42
        $region62: #{tpu_custom_call.1} parent=59 // pred_check_branch
          %385 = sbr.rel (%p383) target = $region64
        $region63: #{tpu_custom_call.1} parent=59 // pred_region
          %p386 = scmp.lt.s32.totalorder %s22, 1
          %s387 = scalar_select %p386, %s22, 1
          %s388 = smul.addr %s387, 6
          %s389 = smul.addr %s388, 8
          %s390 = scalar_lea.vmem %s0, %s389
        $region64: #{tpu_custom_call.1} parent=59 // pred_fallthru
          _
        // Predicated region
        $region65: #{tpu_custom_call.1} parent=59 // pred_check
          %p391 = pneg %p68
        $region66: #{tpu_custom_call.1} parent=59 // pred_check_branch
          %393 = sbr.rel (%p391) target = $region68
        $region67: #{tpu_custom_call.1} parent=59 // pred_region
          %p394 = scmp.lt.s32.totalorder %s22, 1
          %s395 = scalar_select %p394, %s22, 1
          %s396 = smul.addr %s395, 5
          %s397 = smul.addr %s396, 8
          %s398 = scalar_lea.vmem %s1, %s397
        $region68: #{tpu_custom_call.1} parent=59 // pred_fallthru
          _
      $region60: #{tpu_custom_call.1} parent=5 // pred_fallthru
        _
      %p399 = scmp.le.s32.totalorder 1, %s22
      %p400 = scmp.lt.s32.totalorder %s22, 3
      %p401 = pnand %p399, %p400
      %p402 = pneg %p401
      // Predicated region
      $region69: #{tpu_custom_call.1} parent=5 // pred_check
        _
      $region70: #{tpu_custom_call.1} parent=5 // pred_check_branch
        %404 = sbr.rel (%p401) target = $region72
      $region71: #{tpu_custom_call.1} parent=5 // pred_region
        %s405 = ssub.s32 %s22, 1
        %p406 = scmp.lt.s32.totalorder %s27, 1
        %s407 = scalar_select %p406, %s27, 1
        %s408 = smul.addr %s407, 6
        %s409 = smul.addr %s408, 8
        %s410 = scalar_lea.vmem %s0, %s409
        %p411 = pneg %p48
        %p412 = pneg %p45
        %p413 = scmp.lt.s32.totalorder %s27, 1
        %s414 = scalar_select %p413, %s27, 1
        %s415 = smul.addr %s414, 5
        %s416 = smul.addr %s415, 8
        %s417 = scalar_lea.vmem %s1, %s416
        %p418 = pneg %p74
        %p419 = pneg %p71
        %p420 = pneg %p95
        %p421 = pneg %p92
        %p422 = pneg %p116
        %p423 = pneg %p113
        %p424 = pneg %p137
        %p425 = pneg %p134
        %p426 = pneg %p158
        %p427 = pneg %p155
        %p428 = pneg %p179
        %p429 = pneg %p176
        %p430 = pneg %p200
        %p431 = pneg %p197
        %p432 = pneg %p221
        %p433 = pneg %p218
        %p434 = pneg %p242
        %p435 = pneg %p239
        %p436 = pneg %p263
        %p437 = pneg %p260
        %p438 = pneg %p284
        %p439 = pneg %p281
        %p440 = pneg %p305
        %p441 = pneg %p302
        %p442 = pneg %p331
        %p443 = pneg %p328
        %s444 = sand.u32 %s318, 1
        %s445 = scalar_lea.sflag [#allocation3], %s444
        %s446 = sand.u32 %s318, 1
        %s447 = smul.addr %s446, 8
        %s448 = scalar_lea.vmem [#allocation2], %s447
        %p449 = scmp.lt.s32.totalorder %s27, 1
        %s450 = scalar_select %p449, %s27, 1
        %s451 = smul.addr %s450, 6
        %s452 = smul.addr %s451, 8
        %s453 = scalar_lea.vmem %s0, %s452
        %p454 = scmp.lt.s32.totalorder %s27, 1
        %s455 = scalar_select %p454, %s27, 1
        %s456 = smul.addr %s455, 5
        %s457 = smul.addr %s456, 8
        %s458 = scalar_lea.vmem %s1, %s457
        %v459 = vld [vmem:[%s453] sm:$0xff]
        %v460 = vld [vmem:[%s453 + $0x8] sm:$0xff]
        %v461 = vld [vmem:[%s453 + $0x10] sm:$0xff]
        %v462 = vld [vmem:[%s453 + $0x18] sm:$0xff]
        %v463 = vld [vmem:[%s453 + $0x20] sm:$0xff]
        %v464 = vld [vmem:[%s453 + $0x28] sm:$0xff]
        %v465 = vld [vmem:[%s2] sm:$0xff]
        %v466 = vld [vmem:[%s2 + $0x8] sm:$0xff]
        %v467 = vld [vmem:[%s2 + $0x10] sm:$0xff]
        %v468 = vld [vmem:[%s2 + $0x18] sm:$0xff]
        %v469 = vld [vmem:[%s2 + $0x20] sm:$0xff]
        %v470 = vld [vmem:[%s2 + $0x28] sm:$0xff]
        %v471 = vld [vmem:[%s2 + $0x30] sm:$0xff]
        %v472 = vld [vmem:[%s2 + $0x38] sm:$0xff]
        %v473 = vld [vmem:[%s2 + $0x40] sm:$0xff]
        %v474 = vld [vmem:[%s2 + $0x48] sm:$0xff]
        %v475 = vld [vmem:[%s2 + $0x50] sm:$0xff]
        %v476 = vld [vmem:[%s2 + $0x58] sm:$0xff]
        %v477 = vld [vmem:[%s2 + $0x60] sm:$0xff]
        %v478 = vld [vmem:[%s2 + $0x68] sm:$0xff]
        %v479 = vld [vmem:[%s2 + $0x70] sm:$0xff]
        %v480 = vld [vmem:[%s2 + $0x78] sm:$0xff]
        %v481 = vld [vmem:[%s2 + $0x80] sm:$0xff]
        %v482 = vld [vmem:[%s2 + $0x88] sm:$0xff]
        %v483 = vld [vmem:[%s2 + $0x90] sm:$0xff]
        %v484 = vld [vmem:[%s2 + $0x98] sm:$0xff]
        %v485 = vld [vmem:[%s2 + $0xa0] sm:$0xff]
        %v486 = vld [vmem:[%s2 + $0xa8] sm:$0xff]
        %v487 = vld [vmem:[%s2 + $0xb0] sm:$0xff]
        %v488 = vld [vmem:[%s2 + $0xb8] sm:$0xff]
        %v489 = vld [vmem:[%s2 + $0xc0] sm:$0xff]
        %v490 = vld [vmem:[%s2 + $0xc8] sm:$0xff]
        %v491 = vld [vmem:[%s2 + $0xd0] sm:$0xff]
        %v492 = vld [vmem:[%s2 + $0xd8] sm:$0xff]
        %v493 = vld [vmem:[%s2 + $0xe0] sm:$0xff]
        %v494 = vld [vmem:[%s2 + $0xe8] sm:$0xff]
        %v495 = vld [vmem:[%s2 + $0xf0] sm:$0xff]
        %v496 = vld [vmem:[%s2 + $0xf8] sm:$0xff]
        %v497 = vld [vmem:[%s2 + $0x100] sm:$0xff]
        %v498 = vld [vmem:[%s2 + $0x108] sm:$0xff]
        %v499 = vld [vmem:[%s2 + $0x110] sm:$0xff]
        %v500 = vld [vmem:[%s2 + $0x118] sm:$0xff]
        %v501 = vld [vmem:[%s2 + $0x120] sm:$0xff]
        %v502 = vld [vmem:[%s2 + $0x128] sm:$0xff]
        %v503 = vld [vmem:[%s2 + $0x130] sm:$0xff]
        %v504 = vld [vmem:[%s2 + $0x138] sm:$0xff]
        %v505 = vld [vmem:[%s2 + $0x140] sm:$0xff]
        %v506 = vld [vmem:[%s2 + $0x148] sm:$0xff]
        %v507 = vld [vmem:[%s2 + $0x150] sm:$0xff]
        %v508 = vld [vmem:[%s2 + $0x158] sm:$0xff]
        %v509 = vld [vmem:[%s2 + $0x160] sm:$0xff]
        %v510 = vld [vmem:[%s2 + $0x168] sm:$0xff]
        %v511 = vld [vmem:[%s2 + $0x170] sm:$0xff]
        %v512 = vld [vmem:[%s2 + $0x178] sm:$0xff]
        %v513 = vld [vmem:[%s2 + $0x180] sm:$0xff]
        %v514 = vld [vmem:[%s2 + $0x188] sm:$0xff]
        %v515 = vld [vmem:[%s2 + $0x190] sm:$0xff]
        %v516 = vld [vmem:[%s2 + $0x198] sm:$0xff]
        %v517 = vld [vmem:[%s2 + $0x1a0] sm:$0xff]
        %v518 = vld [vmem:[%s2 + $0x1a8] sm:$0xff]
        %v519 = vld [vmem:[%s2 + $0x1b0] sm:$0xff]
        %v520 = vld [vmem:[%s2 + $0x1b8] sm:$0xff]
        %v521 = vld [vmem:[%s2 + $0x1c0] sm:$0xff]
        %v522 = vld [vmem:[%s2 + $0x1c8] sm:$0xff]
        %v523 = vld [vmem:[%s2 + $0x1d0] sm:$0xff]
        %v524 = vld [vmem:[%s2 + $0x1d8] sm:$0xff]
        %v525 = vld [vmem:[%s2 + $0x1e0] sm:$0xff]
        %v526 = vld [vmem:[%s2 + $0x1e8] sm:$0xff]
        %v527 = vld [vmem:[%s2 + $0x1f0] sm:$0xff]
        %v528 = vld [vmem:[%s2 + $0x1f8] sm:$0xff]
        %v529 = vld [vmem:[%s2 + $0x200] sm:$0xff]
        %v530 = vld [vmem:[%s2 + $0x208] sm:$0xff]
        %v531 = vld [vmem:[%s2 + $0x210] sm:$0xff]
        %v532 = vld [vmem:[%s2 + $0x218] sm:$0xff]
        %v533 = vld [vmem:[%s2 + $0x220] sm:$0xff]
        %v534 = vld [vmem:[%s2 + $0x228] sm:$0xff]
        %v535 = vld [vmem:[%s2 + $0x230] sm:$0xff]
        %v536 = vld [vmem:[%s2 + $0x238] sm:$0xff]
        %v537 = vld [vmem:[%s2 + $0x240] sm:$0xff]
        %v538 = vld [vmem:[%s2 + $0x248] sm:$0xff]
        %v539 = vld [vmem:[%s2 + $0x250] sm:$0xff]
        %v540 = vld [vmem:[%s2 + $0x258] sm:$0xff]
        %v541 = vld [vmem:[%s2 + $0x260] sm:$0xff]
        %v542 = vld [vmem:[%s2 + $0x268] sm:$0xff]
        %v543 = vld [vmem:[%s2 + $0x270] sm:$0xff]
        %v544 = vld [vmem:[%s2 + $0x278] sm:$0xff]
        %v545 = vld [vmem:[%s2 + $0x280] sm:$0xff]
        %v546 = vld [vmem:[%s2 + $0x288] sm:$0xff]
        %v547 = vld [vmem:[%s2 + $0x290] sm:$0xff]
        %v548 = vld [vmem:[%s2 + $0x298] sm:$0xff]
        %v549 = vld [vmem:[%s2 + $0x2a0] sm:$0xff]
        %v550 = vld [vmem:[%s2 + $0x2a8] sm:$0xff]
        %v551 = vld [vmem:[%s2 + $0x2b0] sm:$0xff]
        %v552 = vld [vmem:[%s2 + $0x2b8] sm:$0xff]
        %v553 = vld [vmem:[%s2 + $0x2c0] sm:$0xff]
        %v554 = vld [vmem:[%s2 + $0x2c8] sm:$0xff]
        %v555 = vld [vmem:[%s2 + $0x2d0] sm:$0xff]
        %v556 = vld [vmem:[%s2 + $0x2d8] sm:$0xff]
        %v557 = vld [vmem:[%s2 + $0x2e0] sm:$0xff]
        %v558 = vld [vmem:[%s2 + $0x2e8] sm:$0xff]
        %v559 = vld [vmem:[%s2 + $0x2f0] sm:$0xff]
        %v560 = vld [vmem:[%s2 + $0x2f8] sm:$0xff]
        %v561 = vld [vmem:[%s4] sm:$0x1]
        %v563 = vlaneseq
        %v564 = vshrl.u32 %v563, 7
        %v565 = vsub.s32 0, %v564
        %v566 = vrot.slane %v561, %v565
        %568 = vmatprep.subr.mxu0 0.0
        %569 = vmatpush1.msra.mxu0 %v480
        %570 = vmatprep.subr.mxu0 0.0
        %571 = vmatpush1.msra.mxu0 %v479
        %572 = vmatprep.subr.mxu0 0.0
        %573 = vmatpush1.msra.mxu0 %v478
        %574 = vmatprep.subr.mxu0 0.0
        %575 = vmatpush1.msra.mxu0 %v477
        %576 = vmatprep.subr.mxu0 0.0
        %577 = vmatpush1.msra.mxu0 %v476
        %578 = vmatprep.subr.mxu0 0.0
        %579 = vmatpush1.msra.mxu0 %v475
        %580 = vmatprep.subr.mxu0 0.0
        %581 = vmatpush1.msra.mxu0 %v474
        %582 = vmatprep.subr.mxu0 0.0
        %583 = vmatpush1.msra.mxu0 %v473
        %584 = vmatprep.subr.mxu0 0.0
        %585 = vmatpush1.msra.mxu0 %v472
        %586 = vmatprep.subr.mxu0 0.0
        %587 = vmatpush1.msra.mxu0 %v471
        %588 = vmatprep.subr.mxu0 0.0
        %589 = vmatpush1.msra.mxu0 %v470
        %590 = vmatprep.subr.mxu0 0.0
        %591 = vmatpush1.msra.mxu0 %v469
        %592 = vmatprep.subr.mxu0 0.0
        %593 = vmatpush1.msra.mxu0 %v468
        %594 = vmatprep.subr.mxu0 0.0
        %595 = vmatpush1.msra.mxu0 %v467
        %596 = vmatprep.subr.mxu0 0.0
        %597 = vmatpush1.msra.mxu0 %v466
        %598 = vmatprep.subr.mxu0 0.0
        %599 = vmatpush1.msra.mxu0 %v465
        %600 = vmatprep.subr.mxu0 0.0
        %601 = vmatpush2.msra.mxu0 %v496
        %602 = vmatprep.subr.mxu0 0.0
        %603 = vmatpush2.msra.mxu0 %v495
        %604 = vmatprep.subr.mxu0 0.0
        %605 = vmatpush2.msra.mxu0 %v494
        %606 = vmatprep.subr.mxu0 0.0
        %607 = vmatpush2.msra.mxu0 %v493
        %608 = vmatprep.subr.mxu0 0.0
        %609 = vmatpush2.msra.mxu0 %v492
        %610 = vmatprep.subr.mxu0 0.0
        %611 = vmatpush2.msra.mxu0 %v491
        %612 = vmatprep.subr.mxu0 0.0
        %613 = vmatpush2.msra.mxu0 %v490
        %614 = vmatprep.subr.mxu0 0.0
        %615 = vmatpush2.msra.mxu0 %v489
        %616 = vmatprep.subr.mxu0 0.0
        %617 = vmatpush2.msra.mxu0 %v488
        %618 = vmatprep.subr.mxu0 0.0
        %619 = vmatpush2.msra.mxu0 %v487
        %620 = vmatprep.subr.mxu0 0.0
        %621 = vmatpush2.msra.mxu0 %v486
        %622 = vmatprep.subr.mxu0 0.0
        %623 = vmatpush2.msra.mxu0 %v485
        %624 = vmatprep.subr.mxu0 0.0
        %625 = vmatpush2.msra.mxu0 %v484
        %626 = vmatprep.subr.mxu0 0.0
        %627 = vmatpush2.msra.mxu0 %v483
        %628 = vmatprep.subr.mxu0 0.0
        %629 = vmatpush2.msra.mxu0 %v482
        %630 = vmatprep.subr.mxu0 0.0
        %631 = vmatpush2.msra.mxu0 %v481
        %632 = vmatprep.mubr.f32.mxu0 %v460
        %633 = vmatmul.mubr.f32.gmra.mxu0 %v459
        %v634 = vpop.f32.mrf.mxu0
        %v635 = vadd.f32 %v566, %v634
        %v636 = vpop.f32.mrf.mxu0
        %637 = vdwg.mxu0
        %638 = vmatprep.subr.mxu0 0.0
        %639 = vmatpush1.msra.mxu0 %v512
        %640 = vmatprep.subr.mxu0 0.0
        %641 = vmatpush1.msra.mxu0 %v511
        %642 = vmatprep.subr.mxu0 0.0
        %643 = vmatpush1.msra.mxu0 %v510
        %644 = vmatprep.subr.mxu0 0.0
        %645 = vmatpush1.msra.mxu0 %v509
        %646 = vmatprep.subr.mxu0 0.0
        %647 = vmatpush1.msra.mxu0 %v508
        %648 = vmatprep.subr.mxu0 0.0
        %649 = vmatpush1.msra.mxu0 %v507
        %650 = vmatprep.subr.mxu0 0.0
        %651 = vmatpush1.msra.mxu0 %v506
        %652 = vmatprep.subr.mxu0 0.0
        %653 = vmatpush1.msra.mxu0 %v505
        %654 = vmatprep.subr.mxu0 0.0
        %655 = vmatpush1.msra.mxu0 %v504
        %656 = vmatprep.subr.mxu0 0.0
        %657 = vmatpush1.msra.mxu0 %v503
        %658 = vmatprep.subr.mxu0 0.0
        %659 = vmatpush1.msra.mxu0 %v502
        %660 = vmatprep.subr.mxu0 0.0
        %661 = vmatpush1.msra.mxu0 %v501
        %662 = vmatprep.subr.mxu0 0.0
        %663 = vmatpush1.msra.mxu0 %v500
        %664 = vmatprep.subr.mxu0 0.0
        %665 = vmatpush1.msra.mxu0 %v499
        %666 = vmatprep.subr.mxu0 0.0
        %667 = vmatpush1.msra.mxu0 %v498
        %668 = vmatprep.subr.mxu0 0.0
        %669 = vmatpush1.msra.mxu0 %v497
        %670 = vmatprep.subr.mxu0 0.0
        %671 = vmatpush2.msra.mxu0 %v528
        %672 = vmatprep.subr.mxu0 0.0
        %673 = vmatpush2.msra.mxu0 %v527
        %674 = vmatprep.subr.mxu0 0.0
        %675 = vmatpush2.msra.mxu0 %v526
        %676 = vmatprep.subr.mxu0 0.0
        %677 = vmatpush2.msra.mxu0 %v525
        %678 = vmatprep.subr.mxu0 0.0
        %679 = vmatpush2.msra.mxu0 %v524
        %680 = vmatprep.subr.mxu0 0.0
        %681 = vmatpush2.msra.mxu0 %v523
        %682 = vmatprep.subr.mxu0 0.0
        %683 = vmatpush2.msra.mxu0 %v522
        %684 = vmatprep.subr.mxu0 0.0
        %685 = vmatpush2.msra.mxu0 %v521
        %686 = vmatprep.subr.mxu0 0.0
        %687 = vmatpush2.msra.mxu0 %v520
        %688 = vmatprep.subr.mxu0 0.0
        %689 = vmatpush2.msra.mxu0 %v519
        %690 = vmatprep.subr.mxu0 0.0
        %691 = vmatpush2.msra.mxu0 %v518
        %692 = vmatprep.subr.mxu0 0.0
        %693 = vmatpush2.msra.mxu0 %v517
        %694 = vmatprep.subr.mxu0 0.0
        %695 = vmatpush2.msra.mxu0 %v516
        %696 = vmatprep.subr.mxu0 0.0
        %697 = vmatpush2.msra.mxu0 %v515
        %698 = vmatprep.subr.mxu0 0.0
        %699 = vmatpush2.msra.mxu0 %v514
        %700 = vmatprep.subr.mxu0 0.0
        %701 = vmatpush2.msra.mxu0 %v513
        %702 = vmatprep.mubr.f32.mxu0 %v462
        %703 = vmatmul.mubr.f32.gmra.mxu0 %v461
        %v704 = vpop.f32.mrf.mxu0
        %v705 = vadd.f32 %v635, %v704
        %v706 = vpop.f32.mrf.mxu0
        %707 = vdwg.mxu0
        %708 = vmatprep.subr.mxu0 0.0
        %709 = vmatpush1.msra.mxu0 %v544
        %710 = vmatprep.subr.mxu0 0.0
        %711 = vmatpush1.msra.mxu0 %v543
        %712 = vmatprep.subr.mxu0 0.0
        %713 = vmatpush1.msra.mxu0 %v542
        %714 = vmatprep.subr.mxu0 0.0
        %715 = vmatpush1.msra.mxu0 %v541
        %716 = vmatprep.subr.mxu0 0.0
        %717 = vmatpush1.msra.mxu0 %v540
        %718 = vmatprep.subr.mxu0 0.0
        %719 = vmatpush1.msra.mxu0 %v539
        %720 = vmatprep.subr.mxu0 0.0
        %721 = vmatpush1.msra.mxu0 %v538
        %722 = vmatprep.subr.mxu0 0.0
        %723 = vmatpush1.msra.mxu0 %v537
        %724 = vmatprep.subr.mxu0 0.0
        %725 = vmatpush1.msra.mxu0 %v536
        %726 = vmatprep.subr.mxu0 0.0
        %727 = vmatpush1.msra.mxu0 %v535
        %728 = vmatprep.subr.mxu0 0.0
        %729 = vmatpush1.msra.mxu0 %v534
        %730 = vmatprep.subr.mxu0 0.0
        %731 = vmatpush1.msra.mxu0 %v533
        %732 = vmatprep.subr.mxu0 0.0
        %733 = vmatpush1.msra.mxu0 %v532
        %734 = vmatprep.subr.mxu0 0.0
        %735 = vmatpush1.msra.mxu0 %v531
        %736 = vmatprep.subr.mxu0 0.0
        %737 = vmatpush1.msra.mxu0 %v530
        %738 = vmatprep.subr.mxu0 0.0
        %739 = vmatpush1.msra.mxu0 %v529
        %740 = vmatprep.subr.mxu0 0.0
        %741 = vmatpush2.msra.mxu0 %v560
        %742 = vmatprep.subr.mxu0 0.0
        %743 = vmatpush2.msra.mxu0 %v559
        %744 = vmatprep.subr.mxu0 0.0
        %745 = vmatpush2.msra.mxu0 %v558
        %746 = vmatprep.subr.mxu0 0.0
        %747 = vmatpush2.msra.mxu0 %v557
        %748 = vmatprep.subr.mxu0 0.0
        %749 = vmatpush2.msra.mxu0 %v556
        %750 = vmatprep.subr.mxu0 0.0
        %751 = vmatpush2.msra.mxu0 %v555
        %752 = vmatprep.subr.mxu0 0.0
        %753 = vmatpush2.msra.mxu0 %v554
        %754 = vmatprep.subr.mxu0 0.0
        %755 = vmatpush2.msra.mxu0 %v553
        %756 = vmatprep.subr.mxu0 0.0
        %757 = vmatpush2.msra.mxu0 %v552
        %758 = vmatprep.subr.mxu0 0.0
        %759 = vmatpush2.msra.mxu0 %v551
        %760 = vmatprep.subr.mxu0 0.0
        %761 = vmatpush2.msra.mxu0 %v550
        %762 = vmatprep.subr.mxu0 0.0
        %763 = vmatpush2.msra.mxu0 %v549
        %764 = vmatprep.subr.mxu0 0.0
        %765 = vmatpush2.msra.mxu0 %v548
        %766 = vmatprep.subr.mxu0 0.0
        %767 = vmatpush2.msra.mxu0 %v547
        %768 = vmatprep.subr.mxu0 0.0
        %769 = vmatpush2.msra.mxu0 %v546
        %770 = vmatprep.subr.mxu0 0.0
        %771 = vmatpush2.msra.mxu0 %v545
        %772 = vmatprep.mubr.f32.mxu0 %v464
        %773 = vmatmul.mubr.f32.gmra.mxu0 %v463
        %v774 = vpop.f32.mrf.mxu0
        %v775 = vadd.f32 %v705, %v774
        %v776 = vpop.f32.mrf.mxu0
        %777 = vdwg.mxu0
        %v778 = vld [vmem:[%s458] sm:$0xff]
        %v779 = vld [vmem:[%s458 + $0x8] sm:$0xff]
        %v780 = vld [vmem:[%s458 + $0x10] sm:$0xff]
        %v781 = vld [vmem:[%s458 + $0x18] sm:$0xff]
        %v782 = vld [vmem:[%s458 + $0x20] sm:$0xff]
        %v783 = vld [vmem:[%s3] sm:$0xff]
        %v784 = vld [vmem:[%s3 + $0x8] sm:$0xff]
        %v785 = vld [vmem:[%s3 + $0x10] sm:$0xff]
        %v786 = vld [vmem:[%s3 + $0x18] sm:$0xff]
        %v787 = vld [vmem:[%s3 + $0x20] sm:$0xff]
        %v788 = vld [vmem:[%s3 + $0x28] sm:$0xff]
        %v789 = vld [vmem:[%s3 + $0x30] sm:$0xff]
        %v790 = vld [vmem:[%s3 + $0x38] sm:$0xff]
        %v791 = vld [vmem:[%s3 + $0x40] sm:$0xff]
        %v792 = vld [vmem:[%s3 + $0x48] sm:$0xff]
        %v793 = vld [vmem:[%s3 + $0x50] sm:$0xff]
        %v794 = vld [vmem:[%s3 + $0x58] sm:$0xff]
        %v795 = vld [vmem:[%s3 + $0x60] sm:$0xff]
        %v796 = vld [vmem:[%s3 + $0x68] sm:$0xff]
        %v797 = vld [vmem:[%s3 + $0x70] sm:$0xff]
        %v798 = vld [vmem:[%s3 + $0x78] sm:$0xff]
        %v799 = vld [vmem:[%s3 + $0x80] sm:$0xff]
        %v800 = vld [vmem:[%s3 + $0x88] sm:$0xff]
        %v801 = vld [vmem:[%s3 + $0x90] sm:$0xff]
        %v802 = vld [vmem:[%s3 + $0x98] sm:$0xff]
        %v803 = vld [vmem:[%s3 + $0xa0] sm:$0xff]
        %v804 = vld [vmem:[%s3 + $0xa8] sm:$0xff]
        %v805 = vld [vmem:[%s3 + $0xb0] sm:$0xff]
        %v806 = vld [vmem:[%s3 + $0xb8] sm:$0xff]
        %v807 = vld [vmem:[%s3 + $0xc0] sm:$0xff]
        %v808 = vld [vmem:[%s3 + $0xc8] sm:$0xff]
        %v809 = vld [vmem:[%s3 + $0xd0] sm:$0xff]
        %v810 = vld [vmem:[%s3 + $0xd8] sm:$0xff]
        %v811 = vld [vmem:[%s3 + $0xe0] sm:$0xff]
        %v812 = vld [vmem:[%s3 + $0xe8] sm:$0xff]
        %v813 = vld [vmem:[%s3 + $0xf0] sm:$0xff]
        %v814 = vld [vmem:[%s3 + $0xf8] sm:$0xff]
        %v815 = vld [vmem:[%s3 + $0x100] sm:$0xff]
        %v816 = vld [vmem:[%s3 + $0x108] sm:$0xff]
        %v817 = vld [vmem:[%s3 + $0x110] sm:$0xff]
        %v818 = vld [vmem:[%s3 + $0x118] sm:$0xff]
        %v819 = vld [vmem:[%s3 + $0x120] sm:$0xff]
        %v820 = vld [vmem:[%s3 + $0x128] sm:$0xff]
        %v821 = vld [vmem:[%s3 + $0x130] sm:$0xff]
        %v822 = vld [vmem:[%s3 + $0x138] sm:$0xff]
        %v823 = vld [vmem:[%s3 + $0x140] sm:$0xff]
        %v824 = vld [vmem:[%s3 + $0x148] sm:$0xff]
        %v825 = vld [vmem:[%s3 + $0x150] sm:$0xff]
        %v826 = vld [vmem:[%s3 + $0x158] sm:$0xff]
        %v827 = vld [vmem:[%s3 + $0x160] sm:$0xff]
        %v828 = vld [vmem:[%s3 + $0x168] sm:$0xff]
        %v829 = vld [vmem:[%s3 + $0x170] sm:$0xff]
        %v830 = vld [vmem:[%s3 + $0x178] sm:$0xff]
        %v831 = vld [vmem:[%s3 + $0x180] sm:$0xff]
        %v832 = vld [vmem:[%s3 + $0x188] sm:$0xff]
        %v833 = vld [vmem:[%s3 + $0x190] sm:$0xff]
        %v834 = vld [vmem:[%s3 + $0x198] sm:$0xff]
        %v835 = vld [vmem:[%s3 + $0x1a0] sm:$0xff]
        %v836 = vld [vmem:[%s3 + $0x1a8] sm:$0xff]
        %v837 = vld [vmem:[%s3 + $0x1b0] sm:$0xff]
        %v838 = vld [vmem:[%s3 + $0x1b8] sm:$0xff]
        %v839 = vld [vmem:[%s3 + $0x1c0] sm:$0xff]
        %v840 = vld [vmem:[%s3 + $0x1c8] sm:$0xff]
        %v841 = vld [vmem:[%s3 + $0x1d0] sm:$0xff]
        %v842 = vld [vmem:[%s3 + $0x1d8] sm:$0xff]
        %v843 = vld [vmem:[%s3 + $0x1e0] sm:$0xff]
        %v844 = vld [vmem:[%s3 + $0x1e8] sm:$0xff]
        %v845 = vld [vmem:[%s3 + $0x1f0] sm:$0xff]
        %v846 = vld [vmem:[%s3 + $0x1f8] sm:$0xff]
        %v847 = vld [vmem:[%s3 + $0x200] sm:$0xff]
        %v848 = vld [vmem:[%s3 + $0x208] sm:$0xff]
        %v849 = vld [vmem:[%s3 + $0x210] sm:$0xff]
        %v850 = vld [vmem:[%s3 + $0x218] sm:$0xff]
        %v851 = vld [vmem:[%s3 + $0x220] sm:$0xff]
        %v852 = vld [vmem:[%s3 + $0x228] sm:$0xff]
        %v853 = vld [vmem:[%s3 + $0x230] sm:$0xff]
        %v854 = vld [vmem:[%s3 + $0x238] sm:$0xff]
        %v855 = vld [vmem:[%s3 + $0x240] sm:$0xff]
        %v856 = vld [vmem:[%s3 + $0x248] sm:$0xff]
        %v857 = vld [vmem:[%s3 + $0x250] sm:$0xff]
        %v858 = vld [vmem:[%s5] sm:$0x1]
        %v860 = vlaneseq
        %v861 = vshrl.u32 %v860, 7
        %v862 = vsub.s32 0, %v861
        %v863 = vrot.slane %v858, %v862
        %vm865 = vcmask 719872
        %v867 = vsel %vm865, %v782, 0
        %869 = vmatprep.subr.mxu0 0.0
        %870 = vmatpush1.msra.mxu0 %v798
        %871 = vmatprep.subr.mxu0 0.0
        %872 = vmatpush1.msra.mxu0 %v797
        %873 = vmatprep.subr.mxu0 0.0
        %874 = vmatpush1.msra.mxu0 %v796
        %875 = vmatprep.subr.mxu0 0.0
        %876 = vmatpush1.msra.mxu0 %v795
        %877 = vmatprep.subr.mxu0 0.0
        %878 = vmatpush1.msra.mxu0 %v794
        %879 = vmatprep.subr.mxu0 0.0
        %880 = vmatpush1.msra.mxu0 %v793
        %881 = vmatprep.subr.mxu0 0.0
        %882 = vmatpush1.msra.mxu0 %v792
        %883 = vmatprep.subr.mxu0 0.0
        %884 = vmatpush1.msra.mxu0 %v791
        %885 = vmatprep.subr.mxu0 0.0
        %886 = vmatpush1.msra.mxu0 %v790
        %887 = vmatprep.subr.mxu0 0.0
        %888 = vmatpush1.msra.mxu0 %v789
        %889 = vmatprep.subr.mxu0 0.0
        %890 = vmatpush1.msra.mxu0 %v788
        %891 = vmatprep.subr.mxu0 0.0
        %892 = vmatpush1.msra.mxu0 %v787
        %893 = vmatprep.subr.mxu0 0.0
        %894 = vmatpush1.msra.mxu0 %v786
        %895 = vmatprep.subr.mxu0 0.0
        %896 = vmatpush1.msra.mxu0 %v785
        %897 = vmatprep.subr.mxu0 0.0
        %898 = vmatpush1.msra.mxu0 %v784
        %899 = vmatprep.subr.mxu0 0.0
        %900 = vmatpush1.msra.mxu0 %v783
        %901 = vmatprep.subr.mxu0 0.0
        %902 = vmatpush2.msra.mxu0 %v814
        %903 = vmatprep.subr.mxu0 0.0
        %904 = vmatpush2.msra.mxu0 %v813
        %905 = vmatprep.subr.mxu0 0.0
        %906 = vmatpush2.msra.mxu0 %v812
        %907 = vmatprep.subr.mxu0 0.0
        %908 = vmatpush2.msra.mxu0 %v811
        %909 = vmatprep.subr.mxu0 0.0
        %910 = vmatpush2.msra.mxu0 %v810
        %911 = vmatprep.subr.mxu0 0.0
        %912 = vmatpush2.msra.mxu0 %v809
        %913 = vmatprep.subr.mxu0 0.0
        %914 = vmatpush2.msra.mxu0 %v808
        %915 = vmatprep.subr.mxu0 0.0
        %916 = vmatpush2.msra.mxu0 %v807
        %917 = vmatprep.subr.mxu0 0.0
        %918 = vmatpush2.msra.mxu0 %v806
        %919 = vmatprep.subr.mxu0 0.0
        %920 = vmatpush2.msra.mxu0 %v805
        %921 = vmatprep.subr.mxu0 0.0
        %922 = vmatpush2.msra.mxu0 %v804
        %923 = vmatprep.subr.mxu0 0.0
        %924 = vmatpush2.msra.mxu0 %v803
        %925 = vmatprep.subr.mxu0 0.0
        %926 = vmatpush2.msra.mxu0 %v802
        %927 = vmatprep.subr.mxu0 0.0
        %928 = vmatpush2.msra.mxu0 %v801
        %929 = vmatprep.subr.mxu0 0.0
        %930 = vmatpush2.msra.mxu0 %v800
        %931 = vmatprep.subr.mxu0 0.0
        %932 = vmatpush2.msra.mxu0 %v799
        %933 = vmatprep.mubr.f32.mxu0 %v779
        %934 = vmatmul.mubr.f32.gmra.mxu0 %v778
        %v935 = vpop.f32.mrf.mxu0
        %v936 = vadd.f32 %v863, %v935
        %v937 = vpop.f32.mrf.mxu0
        %938 = vdwg.mxu0
        %939 = vmatprep.subr.mxu0 0.0
        %940 = vmatpush1.msra.mxu0 %v830
        %941 = vmatprep.subr.mxu0 0.0
        %942 = vmatpush1.msra.mxu0 %v829
        %943 = vmatprep.subr.mxu0 0.0
        %944 = vmatpush1.msra.mxu0 %v828
        %945 = vmatprep.subr.mxu0 0.0
        %946 = vmatpush1.msra.mxu0 %v827
        %947 = vmatprep.subr.mxu0 0.0
        %948 = vmatpush1.msra.mxu0 %v826
        %949 = vmatprep.subr.mxu0 0.0
        %950 = vmatpush1.msra.mxu0 %v825
        %951 = vmatprep.subr.mxu0 0.0
        %952 = vmatpush1.msra.mxu0 %v824
        %953 = vmatprep.subr.mxu0 0.0
        %954 = vmatpush1.msra.mxu0 %v823
        %955 = vmatprep.subr.mxu0 0.0
        %956 = vmatpush1.msra.mxu0 %v822
        %957 = vmatprep.subr.mxu0 0.0
        %958 = vmatpush1.msra.mxu0 %v821
        %959 = vmatprep.subr.mxu0 0.0
        %960 = vmatpush1.msra.mxu0 %v820
        %961 = vmatprep.subr.mxu0 0.0
        %962 = vmatpush1.msra.mxu0 %v819
        %963 = vmatprep.subr.mxu0 0.0
        %964 = vmatpush1.msra.mxu0 %v818
        %965 = vmatprep.subr.mxu0 0.0
        %966 = vmatpush1.msra.mxu0 %v817
        %967 = vmatprep.subr.mxu0 0.0
        %968 = vmatpush1.msra.mxu0 %v816
        %969 = vmatprep.subr.mxu0 0.0
        %970 = vmatpush1.msra.mxu0 %v815
        %971 = vmatprep.subr.mxu0 0.0
        %972 = vmatpush2.msra.mxu0 %v846
        %973 = vmatprep.subr.mxu0 0.0
        %974 = vmatpush2.msra.mxu0 %v845
        %975 = vmatprep.subr.mxu0 0.0
        %976 = vmatpush2.msra.mxu0 %v844
        %977 = vmatprep.subr.mxu0 0.0
        %978 = vmatpush2.msra.mxu0 %v843
        %979 = vmatprep.subr.mxu0 0.0
        %980 = vmatpush2.msra.mxu0 %v842
        %981 = vmatprep.subr.mxu0 0.0
        %982 = vmatpush2.msra.mxu0 %v841
        %983 = vmatprep.subr.mxu0 0.0
        %984 = vmatpush2.msra.mxu0 %v840
        %985 = vmatprep.subr.mxu0 0.0
        %986 = vmatpush2.msra.mxu0 %v839
        %987 = vmatprep.subr.mxu0 0.0
        %988 = vmatpush2.msra.mxu0 %v838
        %989 = vmatprep.subr.mxu0 0.0
        %990 = vmatpush2.msra.mxu0 %v837
        %991 = vmatprep.subr.mxu0 0.0
        %992 = vmatpush2.msra.mxu0 %v836
        %993 = vmatprep.subr.mxu0 0.0
        %994 = vmatpush2.msra.mxu0 %v835
        %995 = vmatprep.subr.mxu0 0.0
        %996 = vmatpush2.msra.mxu0 %v834
        %997 = vmatprep.subr.mxu0 0.0
        %998 = vmatpush2.msra.mxu0 %v833
        %999 = vmatprep.subr.mxu0 0.0
        %1000 = vmatpush2.msra.mxu0 %v832
        %1001 = vmatprep.subr.mxu0 0.0
        %1002 = vmatpush2.msra.mxu0 %v831
        %1003 = vmatprep.mubr.f32.mxu0 %v781
        %1004 = vmatmul.mubr.f32.gmra.mxu0 %v780
        %v1005 = vpop.f32.mrf.mxu0
        %v1006 = vadd.f32 %v936, %v1005
        %v1007 = vpop.f32.mrf.mxu0
        %1008 = vdwg.mxu0
        %1009 = vmatprep.subr.mxu0 0.0
        %1010 = vmatpush1.msra.mxu0 0.0
        %1011 = vmatprep.subr.mxu0 0.0
        %1012 = vmatpush1.msra.mxu0 0.0
        %1013 = vmatprep.subr.mxu0 0.0
        %1014 = vmatpush1.msra.mxu0 0.0
        %1015 = vmatprep.subr.mxu0 0.0
        %1016 = vmatpush1.msra.mxu0 0.0
        %1017 = vmatprep.subr.mxu0 0.0
        %1018 = vmatpush1.msra.mxu0 0.0
        %1019 = vmatprep.subr.mxu0 0.0
        %1020 = vmatpush1.msra.mxu0 %v857
        %1021 = vmatprep.subr.mxu0 0.0
        %1022 = vmatpush1.msra.mxu0 %v856
        %1023 = vmatprep.subr.mxu0 0.0
        %1024 = vmatpush1.msra.mxu0 %v855
        %1025 = vmatprep.subr.mxu0 0.0
        %1026 = vmatpush1.msra.mxu0 %v854
        %1027 = vmatprep.subr.mxu0 0.0
        %1028 = vmatpush1.msra.mxu0 %v853
        %1029 = vmatprep.subr.mxu0 0.0
        %1030 = vmatpush1.msra.mxu0 %v852
        %1031 = vmatprep.subr.mxu0 0.0
        %1032 = vmatpush1.msra.mxu0 %v851
        %1033 = vmatprep.subr.mxu0 0.0
        %1034 = vmatpush1.msra.mxu0 %v850
        %1035 = vmatprep.subr.mxu0 0.0
        %1036 = vmatpush1.msra.mxu0 %v849
        %1037 = vmatprep.subr.mxu0 0.0
        %1038 = vmatpush1.msra.mxu0 %v848
        %1039 = vmatprep.subr.mxu0 0.0
        %1040 = vmatpush1.msra.mxu0 %v847
        %1041 = vmatprep.subr.mxu0 0.0
        %1042 = vmatpush2.msra.mxu0 0.0
        %1043 = vmatprep.subr.mxu0 0.0
        %1044 = vmatpush2.msra.mxu0 0.0
        %1045 = vmatprep.subr.mxu0 0.0
        %1046 = vmatpush2.msra.mxu0 0.0
        %1047 = vmatprep.subr.mxu0 0.0
        %1048 = vmatpush2.msra.mxu0 0.0
        %1049 = vmatprep.subr.mxu0 0.0
        %1050 = vmatpush2.msra.mxu0 0.0
        %1051 = vmatprep.subr.mxu0 0.0
        %1052 = vmatpush2.msra.mxu0 0.0
        %1053 = vmatprep.subr.mxu0 0.0
        %1054 = vmatpush2.msra.mxu0 0.0
        %1055 = vmatprep.subr.mxu0 0.0
        %1056 = vmatpush2.msra.mxu0 0.0
        %1057 = vmatprep.subr.mxu0 0.0
        %1058 = vmatpush2.msra.mxu0 0.0
        %1059 = vmatprep.subr.mxu0 0.0
        %1060 = vmatpush2.msra.mxu0 0.0
        %1061 = vmatprep.subr.mxu0 0.0
        %1062 = vmatpush2.msra.mxu0 0.0
        %1063 = vmatprep.subr.mxu0 0.0
        %1064 = vmatpush2.msra.mxu0 0.0
        %1065 = vmatprep.subr.mxu0 0.0
        %1066 = vmatpush2.msra.mxu0 0.0
        %1067 = vmatprep.subr.mxu0 0.0
        %1068 = vmatpush2.msra.mxu0 0.0
        %1069 = vmatprep.subr.mxu0 0.0
        %1070 = vmatpush2.msra.mxu0 0.0
        %1071 = vmatprep.subr.mxu0 0.0
        %1072 = vmatpush2.msra.mxu0 0.0
        %1073 = vmatprep.mubr.f32.mxu0 0.0
        %1074 = vmatmul.mubr.f32.gmra.mxu0 %v867
        %v1075 = vpop.f32.mrf.mxu0
        %v1076 = vadd.f32 %v1006, %v1075
        %v1077 = vpop.f32.mrf.mxu0
        %1078 = vdwg.mxu0
        %1080 = vrot.lane.b32.xlu0 %v1076, 64
        %v1081 = vpop.permute.xlu0 %1080
        %vm1083 = vcmask 523264
        %v1084 = vsel %vm1083, %v775, %v1081
        %v1085 = vmul.f32 %v775, %v775
        %v1086 = vsel %vm1083, %v1085, 0.0
        %1087 = vadd.xlane.f32.xlu0 %v1086
        %v1088 = vpop.xlane.xlu0 %1087
        %v1089 = vmul.f32 %v775, %v1076
        %v1090 = vsel %vm1083, %v1089, 0.0
        %1091 = vadd.xlane.f32.xlu0 %v1090
        %v1092 = vpop.xlane.xlu0 %1091
        %v1093 = vmul.f32 %v1076, %v1076
        %v1094 = vsel %vm1083, %v1093, 0.0
        %1095 = vadd.xlane.f32.xlu0 %v1094
        %v1096 = vpop.xlane.xlu0 %1095
        %v1097 = vld [vmem:[%s6] sm:$0x7]
        %v1098 = vlaneseq
        %v1099 = vshrl.u32 %v1098, 7
        %v1100 = vsub.s32 0, %v1099
        %v1101 = vrot.slane %v1097, %v1100
        %v1102 = vmul.f32 %v1088, %v1101
        %v1103 = vlaneseq
        %v1104 = vshrl.u32 %v1103, 7
        %v1105 = vsub.s32 1, %v1104
        %v1106 = vrot.slane %v1097, %v1105
        %v1107 = vmul.f32 %v1092, %v1106
        %v1108 = vadd.f32 %v1102, %v1107
        %v1109 = vlaneseq
        %v1110 = vshrl.u32 %v1109, 7
        %v1111 = vsub.s32 2, %v1110
        %v1112 = vrot.slane %v1097, %v1111
        %v1113 = vmul.f32 %v1096, %v1112
        %v1114 = vadd.f32 %v1108, %v1113
        %v1115 = vtanh.pop %v1114
        %v1116 = vld [vmem:[%s7] sm:$0xff]
        %v1117 = vld [vmem:[%s7 + $0x8] sm:$0xff]
        %v1118 = vld [vmem:[%s7 + $0x10] sm:$0xff]
        %v1119 = vld [vmem:[%s7 + $0x18] sm:$0xff]
        %v1120 = vld [vmem:[%s7 + $0x20] sm:$0xff]
        %v1121 = vld [vmem:[%s7 + $0x28] sm:$0xff]
        %v1122 = vld [vmem:[%s7 + $0x30] sm:$0xff]
        %v1123 = vld [vmem:[%s7 + $0x38] sm:$0xff]
        %v1124 = vld [vmem:[%s7 + $0x40] sm:$0xff]
        %v1125 = vld [vmem:[%s7 + $0x48] sm:$0xff]
        %v1126 = vld [vmem:[%s7 + $0x50] sm:$0xff]
        %v1127 = vld [vmem:[%s7 + $0x58] sm:$0xff]
        %v1128 = vld [vmem:[%s7 + $0x60] sm:$0xff]
        %v1129 = vld [vmem:[%s7 + $0x68] sm:$0xff]
        %v1130 = vld [vmem:[%s7 + $0x70] sm:$0xff]
        %v1131 = vld [vmem:[%s7 + $0x78] sm:$0xff]
        %v1132 = vld [vmem:[%s8] sm:$0xff]
        %v1133 = vld [vmem:[%s8 + $0x8] sm:$0xff]
        %vm1134 = vcmask 130048
        %v1136 = vsel %vm1134, %v1115, 0
        %1138 = vmatprep.subr.mxu0 0.0
        %1139 = vmatpush1.msra.mxu0 0.0
        %1140 = vmatprep.subr.mxu0 0.0
        %1141 = vmatpush1.msra.mxu0 0.0
        %1142 = vmatprep.subr.mxu0 0.0
        %1143 = vmatpush1.msra.mxu0 0.0
        %1144 = vmatprep.subr.mxu0 0.0
        %1145 = vmatpush1.msra.mxu0 0.0
        %1146 = vmatprep.subr.mxu0 0.0
        %1147 = vmatpush1.msra.mxu0 0.0
        %1148 = vmatprep.subr.mxu0 0.0
        %1149 = vmatpush1.msra.mxu0 0.0
        %1150 = vmatprep.subr.mxu0 0.0
        %1151 = vmatpush1.msra.mxu0 0.0
        %1152 = vmatprep.subr.mxu0 0.0
        %1153 = vmatpush1.msra.mxu0 0.0
        %1154 = vmatprep.subr.mxu0 0.0
        %1155 = vmatpush1.msra.mxu0 0.0
        %1156 = vmatprep.subr.mxu0 0.0
        %1157 = vmatpush1.msra.mxu0 0.0
        %1158 = vmatprep.subr.mxu0 0.0
        %1159 = vmatpush1.msra.mxu0 0.0
        %1160 = vmatprep.subr.mxu0 0.0
        %1161 = vmatpush1.msra.mxu0 0.0
        %1162 = vmatprep.subr.mxu0 0.0
        %1163 = vmatpush1.msra.mxu0 0.0
        %1164 = vmatprep.subr.mxu0 0.0
        %1165 = vmatpush1.msra.mxu0 0.0
        %1166 = vmatprep.subr.mxu0 0.0
        %1167 = vmatpush1.msra.mxu0 %v1133
        %1168 = vmatprep.subr.mxu0 0.0
        %1169 = vmatpush1.msra.mxu0 %v1132
        %1170 = vmatprep.subr.mxu0 0.0
        %1171 = vmatpush2.msra.mxu0 0.0
        %1172 = vmatprep.subr.mxu0 0.0
        %1173 = vmatpush2.msra.mxu0 0.0
        %1174 = vmatprep.subr.mxu0 0.0
        %1175 = vmatpush2.msra.mxu0 0.0
        %1176 = vmatprep.subr.mxu0 0.0
        %1177 = vmatpush2.msra.mxu0 0.0
        %1178 = vmatprep.subr.mxu0 0.0
        %1179 = vmatpush2.msra.mxu0 0.0
        %1180 = vmatprep.subr.mxu0 0.0
        %1181 = vmatpush2.msra.mxu0 0.0
        %1182 = vmatprep.subr.mxu0 0.0
        %1183 = vmatpush2.msra.mxu0 0.0
        %1184 = vmatprep.subr.mxu0 0.0
        %1185 = vmatpush2.msra.mxu0 0.0
        %1186 = vmatprep.subr.mxu0 0.0
        %1187 = vmatpush2.msra.mxu0 0.0
        %1188 = vmatprep.subr.mxu0 0.0
        %1189 = vmatpush2.msra.mxu0 0.0
        %1190 = vmatprep.subr.mxu0 0.0
        %1191 = vmatpush2.msra.mxu0 0.0
        %1192 = vmatprep.subr.mxu0 0.0
        %1193 = vmatpush2.msra.mxu0 0.0
        %1194 = vmatprep.subr.mxu0 0.0
        %1195 = vmatpush2.msra.mxu0 0.0
        %1196 = vmatprep.subr.mxu0 0.0
        %1197 = vmatpush2.msra.mxu0 0.0
        %1198 = vmatprep.subr.mxu0 0.0
        %1199 = vmatpush2.msra.mxu0 0.0
        %1200 = vmatprep.subr.mxu0 0.0
        %1201 = vmatpush2.msra.mxu0 0.0
        %1202 = vmatprep.mubr.f32.mxu0 0.0
        %1203 = vmatmul.mubr.f32.gmra.mxu0 %v1136
        %v1204 = vpop.f32.mrf.mxu0
        %v1205 = vadd.f32 0.0, %v1204
        %v1206 = vpop.f32.mrf.mxu0
        %1207 = vdwg.mxu0
        %1208 = vmatprep.subr.mxu0 0.0
        %1209 = vmatpush1.msra.mxu0 %v1131
        %1210 = vmatprep.subr.mxu0 0.0
        %1211 = vmatpush1.msra.mxu0 %v1130
        %1212 = vmatprep.subr.mxu0 0.0
        %1213 = vmatpush1.msra.mxu0 %v1129
        %1214 = vmatprep.subr.mxu0 0.0
        %1215 = vmatpush1.msra.mxu0 %v1128
        %1216 = vmatprep.subr.mxu0 0.0
        %1217 = vmatpush1.msra.mxu0 %v1127
        %1218 = vmatprep.subr.mxu0 0.0
        %1219 = vmatpush1.msra.mxu0 %v1126
        %1220 = vmatprep.subr.mxu0 0.0
        %1221 = vmatpush1.msra.mxu0 %v1125
        %1222 = vmatprep.subr.mxu0 0.0
        %1223 = vmatpush1.msra.mxu0 %v1124
        %1224 = vmatprep.subr.mxu0 0.0
        %1225 = vmatpush1.msra.mxu0 %v1123
        %1226 = vmatprep.subr.mxu0 0.0
        %1227 = vmatpush1.msra.mxu0 %v1122
        %1228 = vmatprep.subr.mxu0 0.0
        %1229 = vmatpush1.msra.mxu0 %v1121
        %1230 = vmatprep.subr.mxu0 0.0
        %1231 = vmatpush1.msra.mxu0 %v1120
        %1232 = vmatprep.subr.mxu0 0.0
        %1233 = vmatpush1.msra.mxu0 %v1119
        %1234 = vmatprep.subr.mxu0 0.0
        %1235 = vmatpush1.msra.mxu0 %v1118
        %1236 = vmatprep.subr.mxu0 0.0
        %1237 = vmatpush1.msra.mxu0 %v1117
        %1238 = vmatprep.subr.mxu0 0.0
        %1239 = vmatpush1.msra.mxu0 %v1116
        %1240 = vmatprep.subr.mxu0 0.0
        %1241 = vmatpush2.msra.mxu0 0.0
        %1242 = vmatprep.subr.mxu0 0.0
        %1243 = vmatpush2.msra.mxu0 0.0
        %1244 = vmatprep.subr.mxu0 0.0
        %1245 = vmatpush2.msra.mxu0 0.0
        %1246 = vmatprep.subr.mxu0 0.0
        %1247 = vmatpush2.msra.mxu0 0.0
        %1248 = vmatprep.subr.mxu0 0.0
        %1249 = vmatpush2.msra.mxu0 0.0
        %1250 = vmatprep.subr.mxu0 0.0
        %1251 = vmatpush2.msra.mxu0 0.0
        %1252 = vmatprep.subr.mxu0 0.0
        %1253 = vmatpush2.msra.mxu0 0.0
        %1254 = vmatprep.subr.mxu0 0.0
        %1255 = vmatpush2.msra.mxu0 0.0
        %1256 = vmatprep.subr.mxu0 0.0
        %1257 = vmatpush2.msra.mxu0 0.0
        %1258 = vmatprep.subr.mxu0 0.0
        %1259 = vmatpush2.msra.mxu0 0.0
        %1260 = vmatprep.subr.mxu0 0.0
        %1261 = vmatpush2.msra.mxu0 0.0
        %1262 = vmatprep.subr.mxu0 0.0
        %1263 = vmatpush2.msra.mxu0 0.0
        %1264 = vmatprep.subr.mxu0 0.0
        %1265 = vmatpush2.msra.mxu0 0.0
        %1266 = vmatprep.subr.mxu0 0.0
        %1267 = vmatpush2.msra.mxu0 0.0
        %1268 = vmatprep.subr.mxu0 0.0
        %1269 = vmatpush2.msra.mxu0 0.0
        %1270 = vmatprep.subr.mxu0 0.0
        %1271 = vmatpush2.msra.mxu0 0.0
        %1272 = vmatprep.mubr.f32.mxu0 0.0
        %1273 = vmatmul.mubr.f32.gmra.mxu0 %v1084
        %v1274 = vpop.f32.mrf.mxu0
        %v1275 = vadd.f32 %v1205, %v1274
        %v1276 = vpop.f32.mrf.mxu0
        %1277 = vdwg.mxu0
        %v1278 = vmax.f32 %v1275, 0.0
        %v1279 = vld [vmem:[%s9] sm:$0xff]
        %v1280 = vld [vmem:[%s9 + $0x8] sm:$0xff]
        %v1281 = vld [vmem:[%s9 + $0x10] sm:$0xff]
        %v1282 = vld [vmem:[%s9 + $0x18] sm:$0xff]
        %v1283 = vld [vmem:[%s9 + $0x20] sm:$0xff]
        %v1284 = vld [vmem:[%s9 + $0x28] sm:$0xff]
        %v1285 = vld [vmem:[%s9 + $0x30] sm:$0xff]
        %v1286 = vld [vmem:[%s9 + $0x38] sm:$0xff]
        %v1288 = vsel %vm1083, %v1278, 0
        %1290 = vmatprep.subr.mxu0 0.0
        %1291 = vmatpush1.msra.mxu0 0.0
        %1292 = vmatprep.subr.mxu0 0.0
        %1293 = vmatpush1.msra.mxu0 0.0
        %1294 = vmatprep.subr.mxu0 0.0
        %1295 = vmatpush1.msra.mxu0 0.0
        %1296 = vmatprep.subr.mxu0 0.0
        %1297 = vmatpush1.msra.mxu0 0.0
        %1298 = vmatprep.subr.mxu0 0.0
        %1299 = vmatpush1.msra.mxu0 0.0
        %1300 = vmatprep.subr.mxu0 0.0
        %1301 = vmatpush1.msra.mxu0 0.0
        %1302 = vmatprep.subr.mxu0 0.0
        %1303 = vmatpush1.msra.mxu0 0.0
        %1304 = vmatprep.subr.mxu0 0.0
        %1305 = vmatpush1.msra.mxu0 0.0
        %1306 = vmatprep.subr.mxu0 0.0
        %1307 = vmatpush1.msra.mxu0 %v1286
        %1308 = vmatprep.subr.mxu0 0.0
        %1309 = vmatpush1.msra.mxu0 %v1285
        %1310 = vmatprep.subr.mxu0 0.0
        %1311 = vmatpush1.msra.mxu0 %v1284
        %1312 = vmatprep.subr.mxu0 0.0
        %1313 = vmatpush1.msra.mxu0 %v1283
        %1314 = vmatprep.subr.mxu0 0.0
        %1315 = vmatpush1.msra.mxu0 %v1282
        %1316 = vmatprep.subr.mxu0 0.0
        %1317 = vmatpush1.msra.mxu0 %v1281
        %1318 = vmatprep.subr.mxu0 0.0
        %1319 = vmatpush1.msra.mxu0 %v1280
        %1320 = vmatprep.subr.mxu0 0.0
        %1321 = vmatpush1.msra.mxu0 %v1279
        %1322 = vmatprep.subr.mxu0 0.0
        %1323 = vmatpush2.msra.mxu0 0.0
        %1324 = vmatprep.subr.mxu0 0.0
        %1325 = vmatpush2.msra.mxu0 0.0
        %1326 = vmatprep.subr.mxu0 0.0
        %1327 = vmatpush2.msra.mxu0 0.0
        %1328 = vmatprep.subr.mxu0 0.0
        %1329 = vmatpush2.msra.mxu0 0.0
        %1330 = vmatprep.subr.mxu0 0.0
        %1331 = vmatpush2.msra.mxu0 0.0
        %1332 = vmatprep.subr.mxu0 0.0
        %1333 = vmatpush2.msra.mxu0 0.0
        %1334 = vmatprep.subr.mxu0 0.0
        %1335 = vmatpush2.msra.mxu0 0.0
        %1336 = vmatprep.subr.mxu0 0.0
        %1337 = vmatpush2.msra.mxu0 0.0
        %1338 = vmatprep.subr.mxu0 0.0
        %1339 = vmatpush2.msra.mxu0 0.0
        %1340 = vmatprep.subr.mxu0 0.0
        %1341 = vmatpush2.msra.mxu0 0.0
        %1342 = vmatprep.subr.mxu0 0.0
        %1343 = vmatpush2.msra.mxu0 0.0
        %1344 = vmatprep.subr.mxu0 0.0
        %1345 = vmatpush2.msra.mxu0 0.0
        %1346 = vmatprep.subr.mxu0 0.0
        %1347 = vmatpush2.msra.mxu0 0.0
        %1348 = vmatprep.subr.mxu0 0.0
        %1349 = vmatpush2.msra.mxu0 0.0
        %1350 = vmatprep.subr.mxu0 0.0
        %1351 = vmatpush2.msra.mxu0 0.0
        %1352 = vmatprep.subr.mxu0 0.0
        %1353 = vmatpush2.msra.mxu0 0.0
        %1354 = vmatprep.mubr.f32.mxu0 0.0
        %1355 = vmatmul.mubr.f32.gmra.mxu0 %v1288
        %v1356 = vpop.f32.mrf.mxu0
        %v1357 = vadd.f32 0.0, %v1356
        %v1358 = vpop.f32.mrf.mxu0
        %1359 = vdwg.mxu0
        %v1360 = vld [vmem:[%s10] sm:$0xff]
        %v1361 = vld [vmem:[%s10 + $0x8] sm:$0xff]
        %v1362 = vld [vmem:[%s10 + $0x10] sm:$0xff]
        %v1363 = vld [vmem:[%s10 + $0x18] sm:$0xff]
        %v1364 = vld [vmem:[%s10 + $0x20] sm:$0xff]
        %v1365 = vld [vmem:[%s10 + $0x28] sm:$0xff]
        %v1366 = vld [vmem:[%s10 + $0x30] sm:$0xff]
        %v1367 = vld [vmem:[%s10 + $0x38] sm:$0xff]
        %v1368 = vld [vmem:[%s10 + $0x40] sm:$0xff]
        %v1369 = vld [vmem:[%s10 + $0x48] sm:$0xff]
        %v1370 = vld [vmem:[%s10 + $0x50] sm:$0xff]
        %v1371 = vld [vmem:[%s10 + $0x58] sm:$0xff]
        %v1372 = vld [vmem:[%s10 + $0x60] sm:$0xff]
        %v1373 = vld [vmem:[%s10 + $0x68] sm:$0xff]
        %v1374 = vld [vmem:[%s10 + $0x70] sm:$0xff]
        %v1375 = vld [vmem:[%s10 + $0x78] sm:$0xff]
        %v1376 = vld [vmem:[%s11] sm:$0xff]
        %v1377 = vld [vmem:[%s11 + $0x8] sm:$0xff]
        %v1379 = vsel %vm1134, %v1357, 0
        %1381 = vmatprep.subr.mxu0 0.0
        %1382 = vmatpush1.msra.mxu0 0.0
        %1383 = vmatprep.subr.mxu0 0.0
        %1384 = vmatpush1.msra.mxu0 0.0
        %1385 = vmatprep.subr.mxu0 0.0
        %1386 = vmatpush1.msra.mxu0 0.0
        %1387 = vmatprep.subr.mxu0 0.0
        %1388 = vmatpush1.msra.mxu0 0.0
        %1389 = vmatprep.subr.mxu0 0.0
        %1390 = vmatpush1.msra.mxu0 0.0
        %1391 = vmatprep.subr.mxu0 0.0
        %1392 = vmatpush1.msra.mxu0 0.0
        %1393 = vmatprep.subr.mxu0 0.0
        %1394 = vmatpush1.msra.mxu0 0.0
        %1395 = vmatprep.subr.mxu0 0.0
        %1396 = vmatpush1.msra.mxu0 0.0
        %1397 = vmatprep.subr.mxu0 0.0
        %1398 = vmatpush1.msra.mxu0 0.0
        %1399 = vmatprep.subr.mxu0 0.0
        %1400 = vmatpush1.msra.mxu0 0.0
        %1401 = vmatprep.subr.mxu0 0.0
        %1402 = vmatpush1.msra.mxu0 0.0
        %1403 = vmatprep.subr.mxu0 0.0
        %1404 = vmatpush1.msra.mxu0 0.0
        %1405 = vmatprep.subr.mxu0 0.0
        %1406 = vmatpush1.msra.mxu0 0.0
        %1407 = vmatprep.subr.mxu0 0.0
        %1408 = vmatpush1.msra.mxu0 0.0
        %1409 = vmatprep.subr.mxu0 0.0
        %1410 = vmatpush1.msra.mxu0 %v1377
        %1411 = vmatprep.subr.mxu0 0.0
        %1412 = vmatpush1.msra.mxu0 %v1376
        %1413 = vmatprep.subr.mxu0 0.0
        %1414 = vmatpush2.msra.mxu0 0.0
        %1415 = vmatprep.subr.mxu0 0.0
        %1416 = vmatpush2.msra.mxu0 0.0
        %1417 = vmatprep.subr.mxu0 0.0
        %1418 = vmatpush2.msra.mxu0 0.0
        %1419 = vmatprep.subr.mxu0 0.0
        %1420 = vmatpush2.msra.mxu0 0.0
        %1421 = vmatprep.subr.mxu0 0.0
        %1422 = vmatpush2.msra.mxu0 0.0
        %1423 = vmatprep.subr.mxu0 0.0
        %1424 = vmatpush2.msra.mxu0 0.0
        %1425 = vmatprep.subr.mxu0 0.0
        %1426 = vmatpush2.msra.mxu0 0.0
        %1427 = vmatprep.subr.mxu0 0.0
        %1428 = vmatpush2.msra.mxu0 0.0
        %1429 = vmatprep.subr.mxu0 0.0
        %1430 = vmatpush2.msra.mxu0 0.0
        %1431 = vmatprep.subr.mxu0 0.0
        %1432 = vmatpush2.msra.mxu0 0.0
        %1433 = vmatprep.subr.mxu0 0.0
        %1434 = vmatpush2.msra.mxu0 0.0
        %1435 = vmatprep.subr.mxu0 0.0
        %1436 = vmatpush2.msra.mxu0 0.0
        %1437 = vmatprep.subr.mxu0 0.0
        %1438 = vmatpush2.msra.mxu0 0.0
        %1439 = vmatprep.subr.mxu0 0.0
        %1440 = vmatpush2.msra.mxu0 0.0
        %1441 = vmatprep.subr.mxu0 0.0
        %1442 = vmatpush2.msra.mxu0 0.0
        %1443 = vmatprep.subr.mxu0 0.0
        %1444 = vmatpush2.msra.mxu0 0.0
        %1445 = vmatprep.mubr.f32.mxu0 0.0
        %1446 = vmatmul.mubr.f32.gmra.mxu0 %v1379
        %v1447 = vpop.f32.mrf.mxu0
        %v1448 = vadd.f32 0.0, %v1447
        %v1449 = vpop.f32.mrf.mxu0
        %1450 = vdwg.mxu0
        %1451 = vmatprep.subr.mxu0 0.0
        %1452 = vmatpush1.msra.mxu0 %v1375
        %1453 = vmatprep.subr.mxu0 0.0
        %1454 = vmatpush1.msra.mxu0 %v1374
        %1455 = vmatprep.subr.mxu0 0.0
        %1456 = vmatpush1.msra.mxu0 %v1373
        %1457 = vmatprep.subr.mxu0 0.0
        %1458 = vmatpush1.msra.mxu0 %v1372
        %1459 = vmatprep.subr.mxu0 0.0
        %1460 = vmatpush1.msra.mxu0 %v1371
        %1461 = vmatprep.subr.mxu0 0.0
        %1462 = vmatpush1.msra.mxu0 %v1370
        %1463 = vmatprep.subr.mxu0 0.0
        %1464 = vmatpush1.msra.mxu0 %v1369
        %1465 = vmatprep.subr.mxu0 0.0
        %1466 = vmatpush1.msra.mxu0 %v1368
        %1467 = vmatprep.subr.mxu0 0.0
        %1468 = vmatpush1.msra.mxu0 %v1367
        %1469 = vmatprep.subr.mxu0 0.0
        %1470 = vmatpush1.msra.mxu0 %v1366
        %1471 = vmatprep.subr.mxu0 0.0
        %1472 = vmatpush1.msra.mxu0 %v1365
        %1473 = vmatprep.subr.mxu0 0.0
        %1474 = vmatpush1.msra.mxu0 %v1364
        %1475 = vmatprep.subr.mxu0 0.0
        %1476 = vmatpush1.msra.mxu0 %v1363
        %1477 = vmatprep.subr.mxu0 0.0
        %1478 = vmatpush1.msra.mxu0 %v1362
        %1479 = vmatprep.subr.mxu0 0.0
        %1480 = vmatpush1.msra.mxu0 %v1361
        %1481 = vmatprep.subr.mxu0 0.0
        %1482 = vmatpush1.msra.mxu0 %v1360
        %1483 = vmatprep.subr.mxu0 0.0
        %1484 = vmatpush2.msra.mxu0 0.0
        %1485 = vmatprep.subr.mxu0 0.0
        %1486 = vmatpush2.msra.mxu0 0.0
        %1487 = vmatprep.subr.mxu0 0.0
        %1488 = vmatpush2.msra.mxu0 0.0
        %1489 = vmatprep.subr.mxu0 0.0
        %1490 = vmatpush2.msra.mxu0 0.0
        %1491 = vmatprep.subr.mxu0 0.0
        %1492 = vmatpush2.msra.mxu0 0.0
        %1493 = vmatprep.subr.mxu0 0.0
        %1494 = vmatpush2.msra.mxu0 0.0
        %1495 = vmatprep.subr.mxu0 0.0
        %1496 = vmatpush2.msra.mxu0 0.0
        %1497 = vmatprep.subr.mxu0 0.0
        %1498 = vmatpush2.msra.mxu0 0.0
        %1499 = vmatprep.subr.mxu0 0.0
        %1500 = vmatpush2.msra.mxu0 0.0
        %1501 = vmatprep.subr.mxu0 0.0
        %1502 = vmatpush2.msra.mxu0 0.0
        %1503 = vmatprep.subr.mxu0 0.0
        %1504 = vmatpush2.msra.mxu0 0.0
        %1505 = vmatprep.subr.mxu0 0.0
        %1506 = vmatpush2.msra.mxu0 0.0
        %1507 = vmatprep.subr.mxu0 0.0
        %1508 = vmatpush2.msra.mxu0 0.0
        %1509 = vmatprep.subr.mxu0 0.0
        %1510 = vmatpush2.msra.mxu0 0.0
        %1511 = vmatprep.subr.mxu0 0.0
        %1512 = vmatpush2.msra.mxu0 0.0
        %1513 = vmatprep.subr.mxu0 0.0
        %1514 = vmatpush2.msra.mxu0 0.0
        %1515 = vmatprep.mubr.f32.mxu0 0.0
        %1516 = vmatmul.mubr.f32.gmra.mxu0 %v1084
        %v1517 = vpop.f32.mrf.mxu0
        %v1518 = vadd.f32 %v1448, %v1517
        %v1519 = vpop.f32.mrf.mxu0
        %1520 = vdwg.mxu0
        %v1521 = vld [vmem:[%s12] sm:$0x1]
        %v1523 = vlaneseq
        %v1524 = vshrl.u32 %v1523, 7
        %v1525 = vsub.s32 0, %v1524
        %v1526 = vrot.slane %v1521, %v1525
        %v1528 = vadd.f32 %v1518, %v1526
        %vm1529 = vcmask 261120
        %1530 = vst.msk [vmem:[%s448] sm:$0xff] %vm1529, %v1528
        %s1531 = sand.u32 %s318, 1
        %s1532 = scalar_lea.sflag [#allocation3], %s1531
        %s1533 = sand.u32 %s318, 1
        %s1534 = smul.addr %s1533, 8
        %s1535 = scalar_lea.vmem [#allocation2], %s1534
        // Predicated region
        $region73: #{tpu_custom_call.1} parent=71 // pred_check
          %p1536 = pneg %p328
        $region74: #{tpu_custom_call.1} parent=71 // pred_check_branch
          %1538 = sbr.rel (%p1536) target = $region76
        $region75: #{tpu_custom_call.1} parent=71 // pred_region
          %s1540 = ssub.s32 128, 128
          %1541 = vsyncadd %s1532, %s1540
          %s1542 = smul.addr %s27, 128
          %s1543 = scalar_lea.hbm %s13, %s1542
          %s1545 = sshll.u32 %s1535, 4
          %s1546 = int_to_ptr.vmem [resolvable:$true] %s1545
          %1548 = dma.vmem_to_hbm [thread:$0]  %s1546, 128, %s1543, %s1532
        $region76: #{tpu_custom_call.1} parent=71 // pred_fallthru
          _
      $region72: #{tpu_custom_call.1} parent=5 // pred_fallthru
        _
      %p1549 = scmp.le.s32.totalorder 2, %s22
      // Predicated region
      $region77: #{tpu_custom_call.1} parent=5 // pred_check
        %p1550 = pneg %p1549
      $region78: #{tpu_custom_call.1} parent=5 // pred_check_branch
        %1552 = sbr.rel (%p1550) target = $region80
      $region79: #{tpu_custom_call.1} parent=5 // pred_region
        %s1553 = ssub.s32 %s22, 2
        // Predicated region
        $region81: #{tpu_custom_call.1} parent=79 // pred_check
          %p1554 = pneg %p334
        $region82: #{tpu_custom_call.1} parent=79 // pred_check_branch
          %1556 = sbr.rel (%p1554) target = $region84
        $region83: #{tpu_custom_call.1} parent=79 // pred_region
          %s1557 = sand.u32 %s319, 1
          %s1558 = scalar_lea.sflag [#allocation3], %s1557
          %s1559 = sand.u32 %s319, 1
          %s1560 = smul.addr %s1559, 8
          %s1561 = scalar_lea.vmem [#allocation2], %s1560
          %1562 = dma.done %s1558, 128
        $region84: #{tpu_custom_call.1} parent=79 // pred_fallthru
          _
      $region80: #{tpu_custom_call.1} parent=5 // pred_fallthru
        _
    $region6: #{tpu_custom_call.1} parent=1 // loop_footer
      %s26 = sadd.s32 1, %s22
    $region7: #{tpu_custom_call.1} parent=1 // loop_footer_branch
      %21 = sbr.rel target = $region3
    $region8: #{tpu_custom_call.1} parent=1 // loop_exit
      _
    %1563 = vsyncpa [#allocation3], 1
    %s1564 = scalar_lea.sflag [#allocation3], 1
    %1565 = vsyncpa %s1564, 1

</llo_original>
